<compile_context>
chip_gen: v7x
topology: tpu7x:2x2x1
jax: 0.10.0
libtpu: 0.0.40
codegen_flags: <defaults>
</compile_context>

<pallas_src>
from functools import partial

import jax
import jax.numpy as jnp
from jax import lax
from jax.experimental import pallas as pl
from jax.experimental.pallas import tpu as pltpu


def _dw_compute_dtype():
    """bf16 depthwise on chips with bf16 VALUs (v6e/v7x); f32 elsewhere (v4/v5e)."""
    try:
        kind = jax.devices()[0].device_kind.lower()
    except Exception:
        return jnp.float32
    return jnp.bfloat16 if ("v6" in kind or "v7" in kind) else jnp.float32


def _pick_ht(H, W, hid):
    """Largest H-tile whose lane extent (Ht*W) is a multiple of 128 and whose
    (hid, ~Ht*W) intermediates stay within a small per-step VMEM budget."""
    budget = 8 << 20
    lane_ok = [d for d in range(1, H + 1) if H % d == 0 and (d * W) % 128 == 0]
    for d in sorted(lane_ok, reverse=True):
        lp = -(-((d + 2) * W) // 128) * 128
        if hid * (6 * lp + 10 * d * W) <= budget:
            return d
    if lane_ok:
        return lane_ok[0]
    # TODO(synk): for ragged spatial sizes (14x14, 7x7, 56x56, ...) pad HW up to
    #             a multiple of 128 in the wrapper so stores stay lane-dense
    #             instead of falling back to a single full-image tile.
    return H


def inverted_residual_kernel(x_ref, w1_ref, b1_ref, dw_ref, b2_ref, w3_ref,
                             b3_ref, cm_ref, vm_ref, o_ref, *,
                             W, Ht, Lp, use_res, dw_dtype):
    t = pl.program_id(1)                       # H-tile index within the image
    HtW = Ht * W
    hid = w1_ref.shape[0]

    # x window covering rows [t*Ht - 1, t*Ht + Ht + 1) of the vertically
    # zero-padded input, rounded up to a 128-lane multiple (Lp).
    start = t * HtW
    if HtW % 128 == 0:
        start = pl.multiple_of(start, 128)
    x_win = x_ref[0, :, pl.ds(start, Lp)]                        # (C, Lp), bf16

    # ---- 1x1 expand conv (bf16 MXU, f32 accumulate) + bias + ReLU6 -----------
    a = jnp.dot(w1_ref[...], x_win.astype(jnp.bfloat16),
                preferred_element_type=jnp.float32)              # (hid, Lp) f32
    a = jnp.clip(a + b1_ref[...], 0.0, 6.0)
    # Zero this tile's vertical conv-padding row(s) + lane-alignment tail
    # (per-tile (1, Lp) mask precomputed in the wrapper) and drop to the
    # depthwise compute dtype (bf16 on v6e/v7x, f32 on v5e).
    a = a.astype(dw_dtype) * vm_ref[0]                           # (hid, Lp)

    # ---- depthwise 3x3, stride 1, pad 1 ---------------------------------------
    # Output row r of the tile sits at window row r+1, so neighbour (di, dj) of
    # output position p is window position p + (di+1)*W + dj.  9 XLU rolls feed
    # VPU MACs; vertical padding is physical in `a`, so no row masks.  The two
    # column masks are applied once per kernel column to the 3-tap row sum.
    dwv = dw_ref[...]                                            # (hid, 9)
    cmask_lr = (cm_ref[0:1, :], None, cm_ref[1:2, :])            # (1, HtW) each
    acc = jnp.zeros((hid, HtW), jnp.float32)
    for dj in (-1, 0, 1):
        csum = None
        for di in (-1, 0, 1):
            off = (di + 1) * W + dj                              # window offset
            k = (di + 1) * 3 + (dj + 1)
            tap = dwv[:, k:k + 1]                                # (hid, 1)
            shifted = pltpu.roll(a, (-off) % Lp, axis=1)[:, :HtW]
            term = shifted * tap                                 # dw_dtype MAC
            csum = term if csum is None else csum + term
        cm = cmask_lr[dj + 1]
        if cm is not None:
            csum = csum * cm
        acc = acc + csum                                         # f32 accumulate
    h = jnp.clip(acc + b2_ref[...], 0.0, 6.0).astype(jnp.bfloat16)

    # ---- 1x1 project conv (bf16 MXU) + bias (+ residual) ----------------------
    out = jnp.dot(w3_ref[...], h, preferred_element_type=jnp.float32)
    out = out + b3_ref[...]
    if use_res:
        out = out + x_win[:, W:W + HtW].astype(jnp.float32)      # residual in f32
    o_ref[0] = out.astype(o_ref.dtype)


def inverted_residual(x_nchw, params, stride=1, ht=None,
                      act_dtype=jnp.bfloat16, dw_dtype=None):
    """Eval-mode MobileNetV2 InvertedResidual (expand_ratio > 1, stride=1)."""
    # TODO(synk): stride=2 and the expand_ratio==1 module variant are not
    #             implemented in-kernel (different op sequence).
    assert stride == 1, "stride=2 not implemented in this kernel"
    N, C, H, W = x_nchw.shape
    hid = params["w1"].shape[0]
    oup = params["w3"].shape[0]
    HW = H * W
    use_res = (stride == 1 and C == oup)
    if dw_dtype is None:
        dw_dtype = _dw_compute_dtype()
    if ht is None:
        ht = _pick_ht(H, W, hid)
    assert H % ht == 0, "H-tile must divide H"
    T = H // ht
    HtW = ht * W
    assert HtW % 128 == 0 or T == 1, "pick ht with ht*W % 128 == 0 (lane-dense)"
    ext = (ht + 2) * W                        # tile rows + 1-row halo each side
    Lp = -(-ext // 128) * 128                 # window width rounded to 128 lanes
    XP = HW - HtW + Lp                        # padded x length = (H+2)*W + (Lp-ext)

    # ---- fold eval-mode BN into conv weights; bf16 operands for the MXU -------
    w1f = (params["w1"] * params["s1"][:, None]).astype(jnp.bfloat16)   # (hid, C)
    dwf = (params["dw"].reshape(hid, 9) * params["s2"][:, None]).astype(dw_dtype)
    w3f = (params["w3"] * params["s3"][:, None]).astype(jnp.bfloat16)   # (oup, hid)
    b1 = params["b1"].reshape(hid, 1).astype(jnp.float32)
    b2 = params["b2"].reshape(hid, 1).astype(jnp.float32)
    b3 = params["b3"].reshape(oup, 1).astype(jnp.float32)

    # ---- activations: NC(HW) bf16 with one zero row of vertical padding on
    #      each side plus a lane-alignment tail ---------------------------------
    x_flat = x_nchw.reshape(N, C, HW).astype(act_dtype)
    x_pad = jnp.pad(x_flat, ((0, 0), (0, 0), (W, XP - W - HW)))

    # ---- boundary masks precomputed once, all (1, lanes)-shaped ----------------
    col = jnp.arange(HtW, dtype=jnp.int32) % W
    cmask = jnp.stack([col >= 1, col <= W - 2]).astype(dw_dtype)        # (2, HtW)
    lane = jnp.arange(Lp, dtype=jnp.int32)[None, :]
    tidx = jnp.arange(T, dtype=jnp.int32)[:, None]
    valid = lane < ext                                            # alignment tail
    valid = valid & ~((tidx == 0) & (lane < W))                   # top conv pad
    valid = valid & ~((tidx == T - 1) & (lane >= (ht + 1) * W))   # bottom conv pad
    vmask = valid.astype(dw_dtype).reshape(T, 1, Lp)

    # ---- per-generation VMEM budget, re-derived from the tiled block sizes ----
    bact, bdw = jnp.dtype(act_dtype).itemsize, jnp.dtype(dw_dtype).itemsize
    est = (2 * C * XP * bact + 2 * oup * HtW * bact           # x window + out tile
           + 4 * (hid * C + oup * hid)                        # bf16 weights (x2 bufs)
           + hid * Lp * (4 + 2 * bdw)                         # expand result + copies
           + hid * HtW * (8 + 2 * bdw)                        # acc + loop temporaries
           + 2 * 128 * 4 * (3 * hid + oup)                    # lane-padded biases/taps
           + 8 * Lp * bdw)                                    # masks
    vmem_limit = int(min(max(2 * est + (4 << 20), 16 << 20), 120 << 20))

    out_flat = pl.pallas_call(
        partial(inverted_residual_kernel, W=W, Ht=ht, Lp=Lp,
                use_res=use_res, dw_dtype=dw_dtype),
        out_shape=jax.ShapeDtypeStruct((N, oup, HW), act_dtype),
        grid=(N, T),
        in_specs=[
            pl.BlockSpec((1, C, XP), lambda n, t: (n, 0, 0)),   # x (resident/image)
            pl.BlockSpec((hid, C), lambda n, t: (0, 0)),        # w1 (s1 folded, bf16)
            pl.BlockSpec((hid, 1), lambda n, t: (0, 0)),        # b1
            pl.BlockSpec((hid, 9), lambda n, t: (0, 0)),        # dw taps (s2 folded)
            pl.BlockSpec((hid, 1), lambda n, t: (0, 0)),        # b2
            pl.BlockSpec((oup, hid), lambda n, t: (0, 0)),      # w3 (s3 folded, bf16)
            pl.BlockSpec((oup, 1), lambda n, t: (0, 0)),        # b3
            pl.BlockSpec((2, HtW), lambda n, t: (0, 0)),        # column masks
            pl.BlockSpec((1, 1, Lp), lambda n, t: (t, 0, 0)),   # per-tile valid mask
        ],
        out_specs=pl.BlockSpec((1, oup, HtW), lambda n, t: (n, 0, t)),
        compiler_params=pltpu.CompilerParams(
            dimension_semantics=("parallel", "parallel"),
            vmem_limit_bytes=vmem_limit,
        ),
    )(x_pad, w1f, b1, dwf, b2, w3f, b3, cmask, vmask)

    return out_flat.reshape(N, oup, H, W)


def fold_bn(gamma, beta, mean, var, eps=1e-5):
    scale = gamma / jnp.sqrt(var + eps)
    bias = beta - mean * scale
    return scale, bias


def make_params(key, inp, oup, expand_ratio):
    hid = int(round(inp * expand_ratio))
    ks = jax.random.split(key, 15)
    w1 = jax.random.normal(ks[0], (hid, inp), jnp.float32) * 0.1   # 1x1 expand (O, I)
    dw = jax.random.normal(ks[1], (hid, 3, 3), jnp.float32) * 0.1  # depthwise (C, 3, 3)
    w3 = jax.random.normal(ks[2], (oup, hid), jnp.float32) * 0.1   # 1x1 project (O, I)

    def bn(kg, kb, km, kv, c):
        gamma = jax.random.uniform(kg, (c,), jnp.float32, 0.5, 1.5)
        beta = jax.random.normal(kb, (c,), jnp.float32) * 0.1
        mean = jax.random.normal(km, (c,), jnp.float32) * 0.1
        var = jax.random.uniform(kv, (c,), jnp.float32, 0.5, 1.5)
        return fold_bn(gamma, beta, mean, var)

    s1, b1 = bn(ks[3], ks[4], ks[5], ks[6], hid)
    s2, b2 = bn(ks[7], ks[8], ks[9], ks[10], hid)
    s3, b3 = bn(ks[11], ks[12], ks[13], ks[14], oup)
    return {"w1": w1, "dw": dw, "w3": w3,
            "s1": s1, "b1": b1, "s2": s2, "b2": b2, "s3": s3, "b3": b3}


def reference(x, p):
    """Pure-JAX NCHW f32 reference with lax convs (mirrors the PyTorch module)."""
    hid = p["dw"].shape[0]
    y = lax.conv_general_dilated(x, p["w1"][:, :, None, None], (1, 1), "VALID",
                                 dimension_numbers=("NCHW", "OIHW", "NCHW"))
    y = y * p["s1"].reshape(1, -1, 1, 1) + p["b1"].reshape(1, -1, 1, 1)
    y = jnp.clip(y, 0.0, 6.0)

    y = lax.conv_general_dilated(y, p["dw"][:, None, :, :], (1, 1), ((1, 1), (1, 1)),
                                 dimension_numbers=("NCHW", "OIHW", "NCHW"),
                                 feature_group_count=hid)
    y = y * p["s2"].reshape(1, -1, 1, 1) + p["b2"].reshape(1, -1, 1, 1)
    y = jnp.clip(y, 0.0, 6.0)

    y = lax.conv_general_dilated(y, p["w3"][:, :, None, None], (1, 1), "VALID",
                                 dimension_numbers=("NCHW", "OIHW", "NCHW"))
    y = y * p["s3"].reshape(1, -1, 1, 1) + p["b3"].reshape(1, -1, 1, 1)
    return x + y


if __name__ == "__main__":
    N, C, H, W = 2, 32, 16, 16
    expand_ratio = 4          # hid = 128, HW = 256 (lane multiple)
    stride = 1
    oup = C                   # inp == oup, stride == 1 -> residual connection

    key = jax.random.PRNGKey(0)
    kx, kp = jax.random.split(key)
    x = jax.random.normal(kx, (N, C, H, W), jnp.float32)
    params = make_params(kp, C, oup, expand_ratio)

    # ht=8 -> 2 H-tiles per image: exercises the halo window, per-tile padding
    # masks, and the lane-dense (oup, Ht*W=128) output blocks.
    out = inverted_residual(x, params, stride=stride, ht=8)
    out = jax.block_until_ready(out)

    ref = jax.block_until_ready(reference(x, params))
    assert out.shape == ref.shape
    # Activations are stored end-to-end in bf16 (HBM I/O, MXU operands, and the
    # depthwise multiplies on v6e/v7x), so tolerance is sized for bf16 rounding
    # vs the full-f32 reference.  Structural bugs (wrong tap/mask/halo) shift
    # whole pixels by O(0.3+), far above this bound.
    max_diff = float(jnp.max(jnp.abs(out.astype(jnp.float32) - ref)))
    assert max_diff < 1.25e-1, f"max abs diff {max_diff}"

    print("KERNEL_OK")
</pallas_src>

<mosaic_0001>
module attributes {stable_mosaic.version = 11 : i64} {
  func.func @inverted_residual_kernel(%arg0: i32, %arg1: i32, %arg2: memref<1x32x384xbf16, #tpu.memory_space<vmem>>, %arg3: memref<128x32xbf16, #tpu.memory_space<vmem>>, %arg4: memref<128x1xf32, #tpu.memory_space<vmem>>, %arg5: memref<128x9xf32, #tpu.memory_space<vmem>>, %arg6: memref<128x1xf32, #tpu.memory_space<vmem>>, %arg7: memref<32x128xbf16, #tpu.memory_space<vmem>>, %arg8: memref<32x1xf32, #tpu.memory_space<vmem>>, %arg9: memref<2x128xf32, #tpu.memory_space<vmem>>, %arg10: memref<1x1x256xf32, #tpu.memory_space<vmem>>, %arg11: memref<1x32x128xbf16, #tpu.memory_space<vmem>>) attributes {dimension_semantics = [#tpu.dimension_semantics<parallel>, #tpu.dimension_semantics<parallel>], iteration_bounds = array<i64: 2, 2>, scalar_prefetch = 0 : i64, scratch_operands = 0 : i64, tpu.core_type = #tpu.core_type<tc>, window_params = [{transform_indices = @transform_0, window_bounds = array<i64: 1, 32, 384>}, {pipeline_mode = #tpu.pipeline_mode<synchronous>, transform_indices = @transform_1, window_bounds = array<i64: 128, 32>}, {pipeline_mode = #tpu.pipeline_mode<synchronous>, transform_indices = @transform_2, window_bounds = array<i64: 128, 1>}, {pipeline_mode = #tpu.pipeline_mode<synchronous>, transform_indices = @transform_3, window_bounds = array<i64: 128, 9>}, {pipeline_mode = #tpu.pipeline_mode<synchronous>, transform_indices = @transform_4, window_bounds = array<i64: 128, 1>}, {pipeline_mode = #tpu.pipeline_mode<synchronous>, transform_indices = @transform_5, window_bounds = array<i64: 32, 128>}, {pipeline_mode = #tpu.pipeline_mode<synchronous>, transform_indices = @transform_6, window_bounds = array<i64: 32, 1>}, {pipeline_mode = #tpu.pipeline_mode<synchronous>, transform_indices = @transform_7, window_bounds = array<i64: 2, 128>}, {transform_indices = @transform_8, window_bounds = array<i64: 1, 1, 256>}, {transform_indices = @transform_9, window_bounds = array<i64: 1, 32, 128>}]} {
    %c128_i32 = arith.constant 128 : i32
    %0 = arith.muli %arg1, %c128_i32 : i32
    %1 = tpu.assume_multiple %0, 128 : i32
    %c0 = arith.constant 0 : index
    %c0_0 = arith.constant 0 : index
    %2 = arith.index_cast %1 : i32 to index
    %3 = vector.load %arg2[%c0, %c0_0, %2] : memref<1x32x384xbf16, #tpu.memory_space<vmem>>, vector<1x32x256xbf16>
    %4 = vector.shape_cast %3 : vector<1x32x256xbf16> to vector<32x256xbf16>
    %c0_1 = arith.constant 0 : index
    %c0_2 = arith.constant 0 : index
    %5 = vector.load %arg3[%c0_1, %c0_2] : memref<128x32xbf16, #tpu.memory_space<vmem>>, vector<128x32xbf16>
    %cst = arith.constant dense<0.000000e+00> : vector<128x256xf32>
    %6 = tpu.matmul %5, %4, %cst {dimension_numbers = #tpu.dot_dimension_numbers<[1], [0], [0], [1], [0, 0, 1, 1], [], []>} : vector<128x32xbf16>, vector<32x256xbf16>, vector<128x256xf32> -> vector<128x256xf32>
    %c0_3 = arith.constant 0 : index
    %c0_4 = arith.constant 0 : index
    %7 = vector.load %arg4[%c0_3, %c0_4] : memref<128x1xf32, #tpu.memory_space<vmem>>, vector<128x1xf32>
    %8 = vector.broadcast %7 : vector<128x1xf32> to vector<128x256xf32>
    %9 = arith.addf %6, %8 : vector<128x256xf32>
    %cst_5 = arith.constant 0.000000e+00 : f32
    %cst_6 = arith.constant 6.000000e+00 : f32
    %10 = vector.broadcast %cst_5 : f32 to vector<128x256xf32>
    %11 = arith.maximumf %10, %9 : vector<128x256xf32>
    %12 = vector.broadcast %cst_6 : f32 to vector<128x256xf32>
    %13 = arith.minimumf %12, %11 : vector<128x256xf32>
    %c0_7 = arith.constant 0 : index
    %c0_8 = arith.constant 0 : index
    %c0_9 = arith.constant 0 : index
    %14 = vector.load %arg10[%c0_7, %c0_8, %c0_9] : memref<1x1x256xf32, #tpu.memory_space<vmem>>, vector<1x1x256xf32>
    %15 = vector.shape_cast %14 : vector<1x1x256xf32> to vector<1x256xf32>
    %16 = vector.broadcast %15 : vector<1x256xf32> to vector<128x256xf32>
    %17 = arith.mulf %13, %16 : vector<128x256xf32>
    %c0_10 = arith.constant 0 : index
    %c0_11 = arith.constant 0 : index
    %18 = vector.load %arg5[%c0_10, %c0_11] : memref<128x9xf32, #tpu.memory_space<vmem>>, vector<128x9xf32>
    %c0_12 = arith.constant 0 : index
    %c0_13 = arith.constant 0 : index
    %19 = vector.load %arg9[%c0_12, %c0_13] : memref<2x128xf32, #tpu.memory_space<vmem>>, vector<1x128xf32>
    %c1 = arith.constant 1 : index
    %c0_14 = arith.constant 0 : index
    %20 = vector.load %arg9[%c1, %c0_14] : memref<2x128xf32, #tpu.memory_space<vmem>>, vector<1x128xf32>
    %cst_15 = arith.constant 0.000000e+00 : f32
    %21 = vector.broadcast %cst_15 : f32 to vector<128x128xf32>
    %22 = vector.extract_strided_slice %18 {offsets = [0, 0], sizes = [128, 1], strides = [1, 1]} : vector<128x9xf32> to vector<128x1xf32>
    %c1_i32 = arith.constant 1 : i32
    %23 = tpu.dynamic_rotate %17 by %c1_i32 dim 1 : vector<128x256xf32>, i32 -> vector<128x256xf32>
    %24 = vector.extract_strided_slice %23 {offsets = [0, 0], sizes = [128, 128], strides = [1, 1]} : vector<128x256xf32> to vector<128x128xf32>
    %25 = vector.broadcast %22 : vector<128x1xf32> to vector<128x128xf32>
    %26 = arith.mulf %24, %25 : vector<128x128xf32>
    %27 = vector.extract_strided_slice %18 {offsets = [0, 3], sizes = [128, 1], strides = [1, 1]} : vector<128x9xf32> to vector<128x1xf32>
    %c241_i32 = arith.constant 241 : i32
    %28 = tpu.dynamic_rotate %17 by %c241_i32 dim 1 : vector<128x256xf32>, i32 -> vector<128x256xf32>
    %29 = vector.extract_strided_slice %28 {offsets = [0, 0], sizes = [128, 128], strides = [1, 1]} : vector<128x256xf32> to vector<128x128xf32>
    %30 = vector.broadcast %27 : vector<128x1xf32> to vector<128x128xf32>
    %31 = arith.mulf %29, %30 : vector<128x128xf32>
    %32 = arith.addf %26, %31 : vector<128x128xf32>
    %33 = vector.extract_strided_slice %18 {offsets = [0, 6], sizes = [128, 1], strides = [1, 1]} : vector<128x9xf32> to vector<128x1xf32>
    %c225_i32 = arith.constant 225 : i32
    %34 = tpu.dynamic_rotate %17 by %c225_i32 dim 1 : vector<128x256xf32>, i32 -> vector<128x256xf32>
    %35 = vector.extract_strided_slice %34 {offsets = [0, 0], sizes = [128, 128], strides = [1, 1]} : vector<128x256xf32> to vector<128x128xf32>
    %36 = vector.broadcast %33 : vector<128x1xf32> to vector<128x128xf32>
    %37 = arith.mulf %35, %36 : vector<128x128xf32>
    %38 = arith.addf %32, %37 : vector<128x128xf32>
    %39 = vector.broadcast %19 : vector<1x128xf32> to vector<128x128xf32>
    %40 = arith.mulf %38, %39 : vector<128x128xf32>
    %41 = arith.addf %21, %40 : vector<128x128xf32>
    %42 = vector.extract_strided_slice %18 {offsets = [0, 1], sizes = [128, 1], strides = [1, 1]} : vector<128x9xf32> to vector<128x1xf32>
    %c0_i32 = arith.constant 0 : i32
    %43 = tpu.dynamic_rotate %17 by %c0_i32 dim 1 : vector<128x256xf32>, i32 -> vector<128x256xf32>
    %44 = vector.extract_strided_slice %43 {offsets = [0, 0], sizes = [128, 128], strides = [1, 1]} : vector<128x256xf32> to vector<128x128xf32>
    %45 = vector.broadcast %42 : vector<128x1xf32> to vector<128x128xf32>
    %46 = arith.mulf %44, %45 : vector<128x128xf32>
    %47 = vector.extract_strided_slice %18 {offsets = [0, 4], sizes = [128, 1], strides = [1, 1]} : vector<128x9xf32> to vector<128x1xf32>
    %c240_i32 = arith.constant 240 : i32
    %48 = tpu.dynamic_rotate %17 by %c240_i32 dim 1 : vector<128x256xf32>, i32 -> vector<128x256xf32>
    %49 = vector.extract_strided_slice %48 {offsets = [0, 0], sizes = [128, 128], strides = [1, 1]} : vector<128x256xf32> to vector<128x128xf32>
    %50 = vector.broadcast %47 : vector<128x1xf32> to vector<128x128xf32>
    %51 = arith.mulf %49, %50 : vector<128x128xf32>
    %52 = arith.addf %46, %51 : vector<128x128xf32>
    %53 = vector.extract_strided_slice %18 {offsets = [0, 7], sizes = [128, 1], strides = [1, 1]} : vector<128x9xf32> to vector<128x1xf32>
    %c224_i32 = arith.constant 224 : i32
    %54 = tpu.dynamic_rotate %17 by %c224_i32 dim 1 : vector<128x256xf32>, i32 -> vector<128x256xf32>
    %55 = vector.extract_strided_slice %54 {offsets = [0, 0], sizes = [128, 128], strides = [1, 1]} : vector<128x256xf32> to vector<128x128xf32>
    %56 = vector.broadcast %53 : vector<128x1xf32> to vector<128x128xf32>
    %57 = arith.mulf %55, %56 : vector<128x128xf32>
    %58 = arith.addf %52, %57 : vector<128x128xf32>
    %59 = arith.addf %41, %58 : vector<128x128xf32>
    %60 = vector.extract_strided_slice %18 {offsets = [0, 2], sizes = [128, 1], strides = [1, 1]} : vector<128x9xf32> to vector<128x1xf32>
    %c255_i32 = arith.constant 255 : i32
    %61 = tpu.dynamic_rotate %17 by %c255_i32 dim 1 : vector<128x256xf32>, i32 -> vector<128x256xf32>
    %62 = vector.extract_strided_slice %61 {offsets = [0, 0], sizes = [128, 128], strides = [1, 1]} : vector<128x256xf32> to vector<128x128xf32>
    %63 = vector.broadcast %60 : vector<128x1xf32> to vector<128x128xf32>
    %64 = arith.mulf %62, %63 : vector<128x128xf32>
    %65 = vector.extract_strided_slice %18 {offsets = [0, 5], sizes = [128, 1], strides = [1, 1]} : vector<128x9xf32> to vector<128x1xf32>
    %c239_i32 = arith.constant 239 : i32
    %66 = tpu.dynamic_rotate %17 by %c239_i32 dim 1 : vector<128x256xf32>, i32 -> vector<128x256xf32>
    %67 = vector.extract_strided_slice %66 {offsets = [0, 0], sizes = [128, 128], strides = [1, 1]} : vector<128x256xf32> to vector<128x128xf32>
    %68 = vector.broadcast %65 : vector<128x1xf32> to vector<128x128xf32>
    %69 = arith.mulf %67, %68 : vector<128x128xf32>
    %70 = arith.addf %64, %69 : vector<128x128xf32>
    %71 = vector.extract_strided_slice %18 {offsets = [0, 8], sizes = [128, 1], strides = [1, 1]} : vector<128x9xf32> to vector<128x1xf32>
    %c223_i32 = arith.constant 223 : i32
    %72 = tpu.dynamic_rotate %17 by %c223_i32 dim 1 : vector<128x256xf32>, i32 -> vector<128x256xf32>
    %73 = vector.extract_strided_slice %72 {offsets = [0, 0], sizes = [128, 128], strides = [1, 1]} : vector<128x256xf32> to vector<128x128xf32>
    %74 = vector.broadcast %71 : vector<128x1xf32> to vector<128x128xf32>
    %75 = arith.mulf %73, %74 : vector<128x128xf32>
    %76 = arith.addf %70, %75 : vector<128x128xf32>
    %77 = vector.broadcast %20 : vector<1x128xf32> to vector<128x128xf32>
    %78 = arith.mulf %76, %77 : vector<128x128xf32>
    %79 = arith.addf %59, %78 : vector<128x128xf32>
    %c0_16 = arith.constant 0 : index
    %c0_17 = arith.constant 0 : index
    %80 = vector.load %arg6[%c0_16, %c0_17] : memref<128x1xf32, #tpu.memory_space<vmem>>, vector<128x1xf32>
    %81 = vector.broadcast %80 : vector<128x1xf32> to vector<128x128xf32>
    %82 = arith.addf %79, %81 : vector<128x128xf32>
    %cst_18 = arith.constant 0.000000e+00 : f32
    %cst_19 = arith.constant 6.000000e+00 : f32
    %83 = vector.broadcast %cst_18 : f32 to vector<128x128xf32>
    %84 = arith.maximumf %83, %82 : vector<128x128xf32>
    %85 = vector.broadcast %cst_19 : f32 to vector<128x128xf32>
    %86 = arith.minimumf %85, %84 : vector<128x128xf32>
    %87 = arith.truncf %86 : vector<128x128xf32> to vector<128x128xbf16>
    %c0_20 = arith.constant 0 : index
    %c0_21 = arith.constant 0 : index
    %88 = vector.load %arg7[%c0_20, %c0_21] : memref<32x128xbf16, #tpu.memory_space<vmem>>, vector<32x128xbf16>
    %cst_22 = arith.constant dense<0.000000e+00> : vector<32x128xf32>
    %89 = tpu.matmul %88, %87, %cst_22 {dimension_numbers = #tpu.dot_dimension_numbers<[1], [0], [0], [1], [0, 0, 1, 1], [], []>} : vector<32x128xbf16>, vector<128x128xbf16>, vector<32x128xf32> -> vector<32x128xf32>
    %c0_23 = arith.constant 0 : index
    %c0_24 = arith.constant 0 : index
    %90 = vector.load %arg8[%c0_23, %c0_24] : memref<32x1xf32, #tpu.memory_space<vmem>>, vector<32x1xf32>
    %91 = vector.broadcast %90 : vector<32x1xf32> to vector<32x128xf32>
    %92 = arith.addf %89, %91 : vector<32x128xf32>
    %93 = vector.extract_strided_slice %4 {offsets = [0, 16], sizes = [32, 128], strides = [1, 1]} : vector<32x256xbf16> to vector<32x128xbf16>
    %94 = arith.extf %93 : vector<32x128xbf16> to vector<32x128xf32>
    %95 = arith.addf %92, %94 : vector<32x128xf32>
    %96 = arith.truncf %95 : vector<32x128xf32> to vector<32x128xbf16>
    %c0_25 = arith.constant 0 : index
    %c0_26 = arith.constant 0 : index
    %c0_27 = arith.constant 0 : index
    %97 = vector.load %arg11[%c0_25, %c0_26, %c0_27] : memref<1x32x128xbf16, #tpu.memory_space<vmem>>, vector<1x32x128xbf16>
    %98 = vector.shape_cast %97 : vector<1x32x128xbf16> to vector<32x128xbf16>
    %99 = vector.shape_cast %96 : vector<32x128xbf16> to vector<1x32x128xbf16>
    tpu.vector_store %arg11[%c0_25, %c0_26, %c0_27], %99 {strides = array<i32>} : memref<1x32x128xbf16, #tpu.memory_space<vmem>>, vector<1x32x128xbf16>,
    return
  }
  func.func @transform_0(%arg0: i32, %arg1: i32) -> (i32, i32, i32) {
    %c0_i32 = arith.constant 0 : i32
    %c0_i32_0 = arith.constant 0 : i32
    %c0_i32_1 = arith.constant 0 : i32
    return %arg0, %c0_i32, %c0_i32_0 : i32, i32, i32
  }
  func.func @transform_1(%arg0: i32, %arg1: i32) -> (i32, i32) {
    %c0_i32 = arith.constant 0 : i32
    %c0_i32_0 = arith.constant 0 : i32
    %c0_i32_1 = arith.constant 0 : i32
    return %c0_i32, %c0_i32_0 : i32, i32
  }
  func.func @transform_2(%arg0: i32, %arg1: i32) -> (i32, i32) {
    %c0_i32 = arith.constant 0 : i32
    %c0_i32_0 = arith.constant 0 : i32
    %c0_i32_1 = arith.constant 0 : i32
    return %c0_i32, %c0_i32_0 : i32, i32
  }
  func.func @transform_3(%arg0: i32, %arg1: i32) -> (i32, i32) {
    %c0_i32 = arith.constant 0 : i32
    %c0_i32_0 = arith.constant 0 : i32
    %c0_i32_1 = arith.constant 0 : i32
    return %c0_i32, %c0_i32_0 : i32, i32
  }
  func.func @transform_4(%arg0: i32, %arg1: i32) -> (i32, i32) {
    %c0_i32 = arith.constant 0 : i32
    %c0_i32_0 = arith.constant 0 : i32
    %c0_i32_1 = arith.constant 0 : i32
    return %c0_i32, %c0_i32_0 : i32, i32
  }
  func.func @transform_5(%arg0: i32, %arg1: i32) -> (i32, i32) {
    %c0_i32 = arith.constant 0 : i32
    %c0_i32_0 = arith.constant 0 : i32
    %c0_i32_1 = arith.constant 0 : i32
    return %c0_i32, %c0_i32_0 : i32, i32
  }
  func.func @transform_6(%arg0: i32, %arg1: i32) -> (i32, i32) {
    %c0_i32 = arith.constant 0 : i32
    %c0_i32_0 = arith.constant 0 : i32
    %c0_i32_1 = arith.constant 0 : i32
    return %c0_i32, %c0_i32_0 : i32, i32
  }
  func.func @transform_7(%arg0: i32, %arg1: i32) -> (i32, i32) {
    %c0_i32 = arith.constant 0 : i32
    %c0_i32_0 = arith.constant 0 : i32
    %c0_i32_1 = arith.constant 0 : i32
    return %c0_i32, %c0_i32_0 : i32, i32
  }
  func.func @transform_8(%arg0: i32, %arg1: i32) -> (i32, i32, i32) {
    %c0_i32 = arith.constant 0 : i32
    %c0_i32_0 = arith.constant 0 : i32
    %c0_i32_1 = arith.constant 0 : i32
    return %arg1, %c0_i32, %c0_i32_0 : i32, i32, i32
  }
  func.func @transform_9(%arg0: i32, %arg1: i32) -> (i32, i32, i32) {
    %c0_i32 = arith.constant 0 : i32
    %c0_i32_0 = arith.constant 0 : i32
    return %arg0, %c0_i32, %arg1 : i32, i32, i32
  }
}

</mosaic_0001>

<llo_original>
// kernel: tpu_custom_call.1
$region0: #{tpu_custom_call.1}
  #allocation0 [shape = 'u32[]', space=smem, size = 0x4, offset = 0x4, fixed_abs, tag = 'smem constant byte address 0x4 - core index']
  #allocation1 [shape = 'u32[144,128]{1,0:T(1,128)}', space=vmem, size = 0x12000, scoped, tag = 'internal scratch']
  %s0 = inlined_call_operand.vmem [shape: bf16[2,32,384], index: 0, kind: input, shape index: {}]
  %s1 = inlined_call_operand.vmem [shape: bf16[128,32], index: 1, kind: input, shape index: {}]
  %s2 = inlined_call_operand.vmem [shape: f32[128,1], index: 2, kind: input, shape index: {}]
  %s3 = inlined_call_operand.vmem [shape: f32[128,9], index: 3, kind: input, shape index: {}]
  %s4 = inlined_call_operand.vmem [shape: f32[128,1], index: 4, kind: input, shape index: {}]
  %s5 = inlined_call_operand.vmem [shape: bf16[32,128], index: 5, kind: input, shape index: {}]
  %s6 = inlined_call_operand.vmem [shape: f32[32,1], index: 6, kind: input, shape index: {}]
  %s7 = inlined_call_operand.vmem [shape: f32[2,128], index: 7, kind: input, shape index: {}]
  %s8 = inlined_call_operand.vmem [shape: f32[2,1,256], index: 8, kind: input, shape index: {}]
  %s9 = inlined_call_operand.hbm [shape: bf16[2,32,256], index: 9, kind: output, shape index: {}]
  %s10 = sld [smem:[#allocation0]]
  $region69: #{tpu_custom_call.1} parent=0
    _
  %s12 = ssub.s32 1, %s10
  %s13 = scalar_select 0, %s12, %s10
  $region1: #{tpu_custom_call.1} parent=0
    #allocation2 [shape = 'u8[16384]{0}', space=vmem, size = 0x4000, scoped, tag = 'output window, operand 0']
    #allocation3 [shape = 's32[2]{0}', space=sflag, size = 0x8, scoped, tag = 'scoped memory for tpu_custom_call.1']
    %14 = vsyncpa [#allocation3], 0
    %s15 = scalar_lea.sflag [#allocation3], 1
    %16 = vsyncpa %s15, 0
    loop: start=0, step=1, limit=6
    $region2: #{tpu_custom_call.1} parent=1 // loop_pre_header
      _
    $region3: #{tpu_custom_call.1} parent=1 // loop_header
      %s18 = sphi 0, %s22
      %p19 = scmp.ge.s32.totalorder %s18, 6
      %s25 = sphi 0, %s37
      %s26 = sphi 0, %s33
      %s27 = sphi 0, %s25
      %s28 = sphi 0, %s26
      %s29 = sphi 0, %s27
      %s30 = sphi 0, %s28
      %s40 = sphi 0, %s42
      %s43 = sphi 0, %s40
      %s44 = sphi 0, %s43
      %s60 = sphi 0, %s44
      %s64 = sphi 0, %s64
      %s66 = sphi 0, %s64
      %s67 = sphi 0, %s66
      %s81 = sphi 0, %s67
      %s85 = sphi 0, %s85
      %s87 = sphi 0, %s85
      %s88 = sphi 0, %s87
      %s102 = sphi 0, %s88
      %s106 = sphi 0, %s106
      %s108 = sphi 0, %s106
      %s109 = sphi 0, %s108
      %s123 = sphi 0, %s109
      %s127 = sphi 0, %s127
      %s129 = sphi 0, %s127
      %s130 = sphi 0, %s129
      %s144 = sphi 0, %s130
      %s148 = sphi 0, %s148
      %s150 = sphi 0, %s148
      %s151 = sphi 0, %s150
      %s165 = sphi 0, %s151
      %s169 = sphi 0, %s169
      %s171 = sphi 0, %s169
      %s172 = sphi 0, %s171
      %s186 = sphi 0, %s172
      %s190 = sphi 0, %s190
      %s192 = sphi 0, %s190
      %s193 = sphi 0, %s192
      %s207 = sphi 0, %s193
      %s213 = sphi 0, %s215
      %s216 = sphi 0, %s213
      %s217 = sphi 0, %s216
      %s233 = sphi 0, %s217
      %s241 = sphi 0, %s243
      %s244 = sphi 0, %s241
      %s245 = sphi 0, %s244
      %s261 = sphi 0, %s245
    $region4: #{tpu_custom_call.1} parent=1 // loop_header_branch
      %21 = sbr.rel (%p19) target = $region8
    $region5: #{tpu_custom_call.1} parent=1 // loop_body
      %s23 = ssub.s32 %s18, 1
      %s24 = ssub.s32 %s18, 2
      %s31 = sadd.s32 1, %s26
      %p32 = scmp.ge.s32.totalorder %s31, 2
      %s33 = scalar_select %p32, 0, %s31
      %s34 = sadd.s32 1, %s25
      %s35 = scalar_select %p32, %s34, %s25
      %p36 = scmp.ge.s32.totalorder %s35, 2
      %s37 = scalar_select %p36, 0, %s35
      %s38 = ssub.s32 %s25, %s37
      %p39 = scmp.eq.s32.totalorder %s38, 0
      %s41 = sadd.s32 %s40, 1
      %s42 = scalar_select %p39, %s40, %s41
      %p45 = pneg %p39
      %p46 = scmp.eq.s32.totalorder %s18, 3
      %p47 = por %p45, %p46
      %p48 = scmp.ne.s32.totalorder %s40, %s43
      %p49 = scmp.eq.s32.totalorder %s18, 0
      %p50 = por %p48, %p49
      %p51 = scmp.ne.s32.totalorder %s40, %s43
      %p52 = scmp.eq.s32.totalorder %s23, 3
      %p53 = por %p51, %p52
      %p54 = scmp.ne.s32.totalorder %s43, %s44
      %p55 = scmp.eq.s32.totalorder %s23, 0
      %p56 = por %p54, %p55
      %p57 = scmp.ne.s32.totalorder %s43, %s44
      %p58 = scmp.eq.s32.totalorder %s24, 3
      %p59 = por %p57, %p58
      %p61 = scmp.ne.s32.totalorder %s44, %s60
      %p62 = scmp.eq.s32.totalorder %s24, 0
      %p63 = por %p61, %p62
      %s65 = sadd.s32 %s64, 1
      %p68 = scmp.eq.s32.totalorder %s18, 3
      %p69 = scmp.ne.s32.totalorder %s64, %s66
      %p70 = scmp.eq.s32.totalorder %s18, 0
      %p71 = por %p69, %p70
      %p72 = scmp.ne.s32.totalorder %s64, %s66
      %p73 = scmp.eq.s32.totalorder %s23, 3
      %p74 = por %p72, %p73
      %p75 = scmp.ne.s32.totalorder %s66, %s67
      %p76 = scmp.eq.s32.totalorder %s23, 0
      %p77 = por %p75, %p76
      %p78 = scmp.ne.s32.totalorder %s66, %s67
      %p79 = scmp.eq.s32.totalorder %s24, 3
      %p80 = por %p78, %p79
      %p82 = scmp.ne.s32.totalorder %s67, %s81
      %p83 = scmp.eq.s32.totalorder %s24, 0
      %p84 = por %p82, %p83
      %s86 = sadd.s32 %s85, 1
      %p89 = scmp.eq.s32.totalorder %s18, 3
      %p90 = scmp.ne.s32.totalorder %s85, %s87
      %p91 = scmp.eq.s32.totalorder %s18, 0
      %p92 = por %p90, %p91
      %p93 = scmp.ne.s32.totalorder %s85, %s87
      %p94 = scmp.eq.s32.totalorder %s23, 3
      %p95 = por %p93, %p94
      %p96 = scmp.ne.s32.totalorder %s87, %s88
      %p97 = scmp.eq.s32.totalorder %s23, 0
      %p98 = por %p96, %p97
      %p99 = scmp.ne.s32.totalorder %s87, %s88
      %p100 = scmp.eq.s32.totalorder %s24, 3
      %p101 = por %p99, %p100
      %p103 = scmp.ne.s32.totalorder %s88, %s102
      %p104 = scmp.eq.s32.totalorder %s24, 0
      %p105 = por %p103, %p104
      %s107 = sadd.s32 %s106, 1
      %p110 = scmp.eq.s32.totalorder %s18, 3
      %p111 = scmp.ne.s32.totalorder %s106, %s108
      %p112 = scmp.eq.s32.totalorder %s18, 0
      %p113 = por %p111, %p112
      %p114 = scmp.ne.s32.totalorder %s106, %s108
      %p115 = scmp.eq.s32.totalorder %s23, 3
      %p116 = por %p114, %p115
      %p117 = scmp.ne.s32.totalorder %s108, %s109
      %p118 = scmp.eq.s32.totalorder %s23, 0
      %p119 = por %p117, %p118
      %p120 = scmp.ne.s32.totalorder %s108, %s109
      %p121 = scmp.eq.s32.totalorder %s24, 3
      %p122 = por %p120, %p121
      %p124 = scmp.ne.s32.totalorder %s109, %s123
      %p125 = scmp.eq.s32.totalorder %s24, 0
      %p126 = por %p124, %p125
      %s128 = sadd.s32 %s127, 1
      %p131 = scmp.eq.s32.totalorder %s18, 3
      %p132 = scmp.ne.s32.totalorder %s127, %s129
      %p133 = scmp.eq.s32.totalorder %s18, 0
      %p134 = por %p132, %p133
      %p135 = scmp.ne.s32.totalorder %s127, %s129
      %p136 = scmp.eq.s32.totalorder %s23, 3
      %p137 = por %p135, %p136
      %p138 = scmp.ne.s32.totalorder %s129, %s130
      %p139 = scmp.eq.s32.totalorder %s23, 0
      %p140 = por %p138, %p139
      %p141 = scmp.ne.s32.totalorder %s129, %s130
      %p142 = scmp.eq.s32.totalorder %s24, 3
      %p143 = por %p141, %p142
      %p145 = scmp.ne.s32.totalorder %s130, %s144
      %p146 = scmp.eq.s32.totalorder %s24, 0
      %p147 = por %p145, %p146
      %s149 = sadd.s32 %s148, 1
      %p152 = scmp.eq.s32.totalorder %s18, 3
      %p153 = scmp.ne.s32.totalorder %s148, %s150
      %p154 = scmp.eq.s32.totalorder %s18, 0
      %p155 = por %p153, %p154
      %p156 = scmp.ne.s32.totalorder %s148, %s150
      %p157 = scmp.eq.s32.totalorder %s23, 3
      %p158 = por %p156, %p157
      %p159 = scmp.ne.s32.totalorder %s150, %s151
      %p160 = scmp.eq.s32.totalorder %s23, 0
      %p161 = por %p159, %p160
      %p162 = scmp.ne.s32.totalorder %s150, %s151
      %p163 = scmp.eq.s32.totalorder %s24, 3
      %p164 = por %p162, %p163
      %p166 = scmp.ne.s32.totalorder %s151, %s165
      %p167 = scmp.eq.s32.totalorder %s24, 0
      %p168 = por %p166, %p167
      %s170 = sadd.s32 %s169, 1
      %p173 = scmp.eq.s32.totalorder %s18, 3
      %p174 = scmp.ne.s32.totalorder %s169, %s171
      %p175 = scmp.eq.s32.totalorder %s18, 0
      %p176 = por %p174, %p175
      %p177 = scmp.ne.s32.totalorder %s169, %s171
      %p178 = scmp.eq.s32.totalorder %s23, 3
      %p179 = por %p177, %p178
      %p180 = scmp.ne.s32.totalorder %s171, %s172
      %p181 = scmp.eq.s32.totalorder %s23, 0
      %p182 = por %p180, %p181
      %p183 = scmp.ne.s32.totalorder %s171, %s172
      %p184 = scmp.eq.s32.totalorder %s24, 3
      %p185 = por %p183, %p184
      %p187 = scmp.ne.s32.totalorder %s172, %s186
      %p188 = scmp.eq.s32.totalorder %s24, 0
      %p189 = por %p187, %p188
      %s191 = sadd.s32 %s190, 1
      %p194 = scmp.eq.s32.totalorder %s18, 3
      %p195 = scmp.ne.s32.totalorder %s190, %s192
      %p196 = scmp.eq.s32.totalorder %s18, 0
      %p197 = por %p195, %p196
      %p198 = scmp.ne.s32.totalorder %s190, %s192
      %p199 = scmp.eq.s32.totalorder %s23, 3
      %p200 = por %p198, %p199
      %p201 = scmp.ne.s32.totalorder %s192, %s193
      %p202 = scmp.eq.s32.totalorder %s23, 0
      %p203 = por %p201, %p202
      %p204 = scmp.ne.s32.totalorder %s192, %s193
      %p205 = scmp.eq.s32.totalorder %s24, 3
      %p206 = por %p204, %p205
      %p208 = scmp.ne.s32.totalorder %s193, %s207
      %p209 = scmp.eq.s32.totalorder %s24, 0
      %p210 = por %p208, %p209
      %s211 = ssub.s32 %s26, %s33
      %p212 = scmp.eq.s32.totalorder %s211, 0
      %s214 = sadd.s32 %s213, 1
      %s215 = scalar_select %p212, %s213, %s214
      %p218 = pneg %p212
      %p219 = scmp.eq.s32.totalorder %s18, 3
      %p220 = por %p218, %p219
      %p221 = scmp.ne.s32.totalorder %s213, %s216
      %p222 = scmp.eq.s32.totalorder %s18, 0
      %p223 = por %p221, %p222
      %p224 = scmp.ne.s32.totalorder %s213, %s216
      %p225 = scmp.eq.s32.totalorder %s23, 3
      %p226 = por %p224, %p225
      %p227 = scmp.ne.s32.totalorder %s216, %s217
      %p228 = scmp.eq.s32.totalorder %s23, 0
      %p229 = por %p227, %p228
      %p230 = scmp.ne.s32.totalorder %s216, %s217
      %p231 = scmp.eq.s32.totalorder %s24, 3
      %p232 = por %p230, %p231
      %p234 = scmp.ne.s32.totalorder %s217, %s233
      %p235 = scmp.eq.s32.totalorder %s24, 0
      %p236 = por %p234, %p235
      %s237 = ssub.s32 %s25, %s37
      %s238 = ssub.s32 %s26, %s33
      %s239 = sor.u32 %s237, %s238
      %p240 = scmp.eq.s32.totalorder %s239, 0
      %s242 = sadd.s32 %s241, 1
      %s243 = scalar_select %p240, %s241, %s242
      %p246 = pneg %p240
      %p247 = scmp.eq.s32.totalorder %s18, 3
      %p248 = por %p246, %p247
      %p249 = scmp.ne.s32.totalorder %s241, %s244
      %p250 = scmp.eq.s32.totalorder %s18, 0
      %p251 = por %p249, %p250
      %p252 = scmp.ne.s32.totalorder %s241, %s244
      %p253 = scmp.eq.s32.totalorder %s23, 3
      %p254 = por %p252, %p253
      %p255 = scmp.ne.s32.totalorder %s244, %s245
      %p256 = scmp.eq.s32.totalorder %s23, 0
      %p257 = por %p255, %p256
      %p258 = scmp.ne.s32.totalorder %s244, %s245
      %p259 = scmp.eq.s32.totalorder %s24, 3
      %p260 = por %p258, %p259
      %p262 = scmp.ne.s32.totalorder %s245, %s261
      %p263 = scmp.eq.s32.totalorder %s24, 0
      %p264 = por %p262, %p263
      %p265 = scmp.le.s32.totalorder 1, %s18
      %p266 = scmp.lt.s32.totalorder %s18, 5
      %p267 = pnand %p265, %p266
      %p268 = pneg %p267
      // Predicated region
      $region9: #{tpu_custom_call.1} parent=5 // pred_check
        _
      $region10: #{tpu_custom_call.1} parent=5 // pred_check_branch
        %270 = sbr.rel (%p267) target = $region12
      $region11: #{tpu_custom_call.1} parent=5 // pred_region
        %s271 = ssub.s32 %s18, 1
        // Predicated region
        $region13: #{tpu_custom_call.1} parent=11 // pred_check
          %p272 = pneg %p77
        $region14: #{tpu_custom_call.1} parent=11 // pred_check_branch
          %274 = sbr.rel (%p272) target = $region16
        $region15: #{tpu_custom_call.1} parent=11 // pred_region
          _
        $region16: #{tpu_custom_call.1} parent=11 // pred_fallthru
          _
        // Predicated region
        $region17: #{tpu_custom_call.1} parent=11 // pred_check
          %p275 = pneg %p98
        $region18: #{tpu_custom_call.1} parent=11 // pred_check_branch
          %277 = sbr.rel (%p275) target = $region20
        $region19: #{tpu_custom_call.1} parent=11 // pred_region
          _
        $region20: #{tpu_custom_call.1} parent=11 // pred_fallthru
          _
        // Predicated region
        $region21: #{tpu_custom_call.1} parent=11 // pred_check
          %p278 = pneg %p119
        $region22: #{tpu_custom_call.1} parent=11 // pred_check_branch
          %280 = sbr.rel (%p278) target = $region24
        $region23: #{tpu_custom_call.1} parent=11 // pred_region
          _
        $region24: #{tpu_custom_call.1} parent=11 // pred_fallthru
          _
        // Predicated region
        $region25: #{tpu_custom_call.1} parent=11 // pred_check
          %p281 = pneg %p140
        $region26: #{tpu_custom_call.1} parent=11 // pred_check_branch
          %283 = sbr.rel (%p281) target = $region28
        $region27: #{tpu_custom_call.1} parent=11 // pred_region
          _
        $region28: #{tpu_custom_call.1} parent=11 // pred_fallthru
          _
        // Predicated region
        $region29: #{tpu_custom_call.1} parent=11 // pred_check
          %p284 = pneg %p161
        $region30: #{tpu_custom_call.1} parent=11 // pred_check_branch
          %286 = sbr.rel (%p284) target = $region32
        $region31: #{tpu_custom_call.1} parent=11 // pred_region
          _
        $region32: #{tpu_custom_call.1} parent=11 // pred_fallthru
          _
        // Predicated region
        $region33: #{tpu_custom_call.1} parent=11 // pred_check
          %p287 = pneg %p182
        $region34: #{tpu_custom_call.1} parent=11 // pred_check_branch
          %289 = sbr.rel (%p287) target = $region36
        $region35: #{tpu_custom_call.1} parent=11 // pred_region
          _
        $region36: #{tpu_custom_call.1} parent=11 // pred_fallthru
          _
        // Predicated region
        $region37: #{tpu_custom_call.1} parent=11 // pred_check
          %p290 = pneg %p203
        $region38: #{tpu_custom_call.1} parent=11 // pred_check_branch
          %292 = sbr.rel (%p290) target = $region40
        $region39: #{tpu_custom_call.1} parent=11 // pred_region
          _
        $region40: #{tpu_custom_call.1} parent=11 // pred_fallthru
          _
      $region12: #{tpu_custom_call.1} parent=5 // pred_fallthru
        _
      %p293 = scmp.lt.s32.totalorder %s18, 4
      // Predicated region
      $region41: #{tpu_custom_call.1} parent=5 // pred_check
        %p294 = pneg %p293
      $region42: #{tpu_custom_call.1} parent=5 // pred_check_branch
        %296 = sbr.rel (%p294) target = $region44
      $region43: #{tpu_custom_call.1} parent=5 // pred_region
        // Predicated region
        $region45: #{tpu_custom_call.1} parent=43 // pred_check
          %p297 = pneg %p50
        $region46: #{tpu_custom_call.1} parent=43 // pred_check_branch
          %299 = sbr.rel (%p297) target = $region48
        $region47: #{tpu_custom_call.1} parent=43 // pred_region
          %p300 = scmp.lt.s32.totalorder %s25, 1
          %s301 = scalar_select %p300, %s25, 1
          %s302 = smul.addr %s301, 12
          %s303 = smul.addr %s302, 4
          %s304 = scalar_lea.vmem %s0, %s303
        $region48: #{tpu_custom_call.1} parent=43 // pred_fallthru
          _
        // Predicated region
        $region49: #{tpu_custom_call.1} parent=43 // pred_check
          %p305 = pneg %p223
        $region50: #{tpu_custom_call.1} parent=43 // pred_check_branch
          %307 = sbr.rel (%p305) target = $region52
        $region51: #{tpu_custom_call.1} parent=43 // pred_region
          %p308 = scmp.lt.s32.totalorder %s26, 1
          %s309 = scalar_select %p308, %s26, 1
          %s310 = smul.addr %s309, 2
          %s311 = scalar_lea.vmem %s8, %s310
        $region52: #{tpu_custom_call.1} parent=43 // pred_fallthru
          _
      $region44: #{tpu_custom_call.1} parent=5 // pred_fallthru
        _
      %p312 = scmp.le.s32.totalorder 1, %s18
      %p313 = scmp.lt.s32.totalorder %s18, 5
      %p314 = pnand %p312, %p313
      %p315 = pneg %p314
      // Predicated region
      $region53: #{tpu_custom_call.1} parent=5 // pred_check
        _
      $region54: #{tpu_custom_call.1} parent=5 // pred_check_branch
        %317 = sbr.rel (%p314) target = $region56
      $region55: #{tpu_custom_call.1} parent=5 // pred_region
        %s318 = ssub.s32 %s18, 1
        %p319 = scmp.lt.s32.totalorder %s27, 1
        %s320 = scalar_select %p319, %s27, 1
        %s321 = smul.addr %s320, 12
        %s322 = smul.addr %s321, 4
        %s323 = scalar_lea.vmem %s0, %s322
        %p324 = pneg %p56
        %p325 = pneg %p53
        %p326 = pneg %p77
        %p327 = pneg %p74
        %p328 = pneg %p98
        %p329 = pneg %p95
        %p330 = pneg %p119
        %p331 = pneg %p116
        %p332 = pneg %p140
        %p333 = pneg %p137
        %p334 = pneg %p161
        %p335 = pneg %p158
        %p336 = pneg %p182
        %p337 = pneg %p179
        %p338 = pneg %p203
        %p339 = pneg %p200
        %p340 = scmp.lt.s32.totalorder %s28, 1
        %s341 = scalar_select %p340, %s28, 1
        %s342 = smul.addr %s341, 2
        %s343 = scalar_lea.vmem %s8, %s342
        %p344 = pneg %p229
        %p345 = pneg %p226
        %p346 = pneg %p257
        %p347 = pneg %p254
        %s348 = sand.u32 %s244, 1
        %s349 = scalar_lea.sflag [#allocation3], %s348
        %s350 = sand.u32 %s244, 1
        %s351 = smul.addr %s350, 16
        %s352 = scalar_lea.vmem [#allocation2], %s351
        %p353 = scmp.lt.s32.totalorder %s27, 1
        %s354 = scalar_select %p353, %s27, 1
        %s355 = smul.addr %s354, 12
        %s356 = smul.addr %s355, 4
        %s357 = scalar_lea.vmem %s0, %s356
        %p358 = scmp.lt.s32.totalorder %s28, 1
        %s359 = scalar_select %p358, %s28, 1
        %s360 = smul.addr %s359, 2
        %s361 = scalar_lea.vmem %s8, %s360
        %s363 = smul.u32 %s28, 128
        %s364 = sshra.s32 %s363, 7
        %s365 = sand.u32 %s363, 127
        %s366 = smul.addr %s364, 4
        %s367 = scalar_lea.vmem %s357, %s366
        %v368 = vld [vmem:[%s367] sm:$0xff]
        %v369 = vld [vmem:[%s367 + $0xc] sm:$0xff]
        %v370 = vld [vmem:[%s367 + $0x18] sm:$0xff]
        %v371 = vld [vmem:[%s367 + $0x24] sm:$0xff]
        %v372 = vld [vmem:[%s1] sm:$0xf]
        %v373 = vld [vmem:[%s1 + $0x4] sm:$0xf]
        %v374 = vld [vmem:[%s1 + $0x8] sm:$0xf]
        %v375 = vld [vmem:[%s1 + $0xc] sm:$0xf]
        %v376 = vld [vmem:[%s1 + $0x10] sm:$0xf]
        %v377 = vld [vmem:[%s1 + $0x14] sm:$0xf]
        %v378 = vld [vmem:[%s1 + $0x18] sm:$0xf]
        %v379 = vld [vmem:[%s1 + $0x1c] sm:$0xf]
        %v380 = vld [vmem:[%s1 + $0x20] sm:$0xf]
        %v381 = vld [vmem:[%s1 + $0x24] sm:$0xf]
        %v382 = vld [vmem:[%s1 + $0x28] sm:$0xf]
        %v383 = vld [vmem:[%s1 + $0x2c] sm:$0xf]
        %v384 = vld [vmem:[%s1 + $0x30] sm:$0xf]
        %v385 = vld [vmem:[%s1 + $0x34] sm:$0xf]
        %v386 = vld [vmem:[%s1 + $0x38] sm:$0xf]
        %v387 = vld [vmem:[%s1 + $0x3c] sm:$0xf]
        %v388 = vld [vmem:[%s2] sm:$0xff]
        %v389 = vld [vmem:[%s2 + $0x8] sm:$0xff]
        %v390 = vld [vmem:[%s2 + $0x10] sm:$0xff]
        %v391 = vld [vmem:[%s2 + $0x18] sm:$0xff]
        %v392 = vld [vmem:[%s2 + $0x20] sm:$0xff]
        %v393 = vld [vmem:[%s2 + $0x28] sm:$0xff]
        %v394 = vld [vmem:[%s2 + $0x30] sm:$0xff]
        %v395 = vld [vmem:[%s2 + $0x38] sm:$0xff]
        %v396 = vld [vmem:[%s2 + $0x40] sm:$0xff]
        %v397 = vld [vmem:[%s2 + $0x48] sm:$0xff]
        %v398 = vld [vmem:[%s2 + $0x50] sm:$0xff]
        %v399 = vld [vmem:[%s2 + $0x58] sm:$0xff]
        %v400 = vld [vmem:[%s2 + $0x60] sm:$0xff]
        %v401 = vld [vmem:[%s2 + $0x68] sm:$0xff]
        %v402 = vld [vmem:[%s2 + $0x70] sm:$0xff]
        %v403 = vld [vmem:[%s2 + $0x78] sm:$0xff]
        %405 = vset.pattern.permute.xlu0 0
        %406 = vperm.xlu0 %405, %v388
        %v407 = vpop.permute.xlu0 %406
        %410 = vset.pattern.permute.xlu0 0
        %411 = vperm.xlu0 %410, %v389
        %v412 = vpop.permute.xlu0 %411
        %415 = vset.pattern.permute.xlu0 0
        %416 = vperm.xlu0 %415, %v390
        %v417 = vpop.permute.xlu0 %416
        %420 = vset.pattern.permute.xlu0 0
        %421 = vperm.xlu0 %420, %v391
        %v422 = vpop.permute.xlu0 %421
        %425 = vset.pattern.permute.xlu0 0
        %426 = vperm.xlu0 %425, %v392
        %v427 = vpop.permute.xlu0 %426
        %430 = vset.pattern.permute.xlu0 0
        %431 = vperm.xlu0 %430, %v393
        %v432 = vpop.permute.xlu0 %431
        %435 = vset.pattern.permute.xlu0 0
        %436 = vperm.xlu0 %435, %v394
        %v437 = vpop.permute.xlu0 %436
        %440 = vset.pattern.permute.xlu0 0
        %441 = vperm.xlu0 %440, %v395
        %v442 = vpop.permute.xlu0 %441
        %445 = vset.pattern.permute.xlu0 0
        %446 = vperm.xlu0 %445, %v396
        %v447 = vpop.permute.xlu0 %446
        %450 = vset.pattern.permute.xlu0 0
        %451 = vperm.xlu0 %450, %v397
        %v452 = vpop.permute.xlu0 %451
        %455 = vset.pattern.permute.xlu0 0
        %456 = vperm.xlu0 %455, %v398
        %v457 = vpop.permute.xlu0 %456
        %460 = vset.pattern.permute.xlu0 0
        %461 = vperm.xlu0 %460, %v399
        %v462 = vpop.permute.xlu0 %461
        %465 = vset.pattern.permute.xlu0 0
        %466 = vperm.xlu0 %465, %v400
        %v467 = vpop.permute.xlu0 %466
        %470 = vset.pattern.permute.xlu0 0
        %471 = vperm.xlu0 %470, %v401
        %v472 = vpop.permute.xlu0 %471
        %475 = vset.pattern.permute.xlu0 0
        %476 = vperm.xlu0 %475, %v402
        %v477 = vpop.permute.xlu0 %476
        %480 = vset.pattern.permute.xlu0 0
        %481 = vperm.xlu0 %480, %v403
        %v482 = vpop.permute.xlu0 %481
        %v500 = vunpack.c.l.b16 %v372
        %v501 = vunpack.c.l.b16 %v373
        %v502 = vunpack.c.l.b16 %v374
        %v503 = vunpack.c.l.b16 %v375
        %v504 = vunpack.c.l.b16 %v376
        %v505 = vunpack.c.l.b16 %v377
        %v506 = vunpack.c.l.b16 %v378
        %v507 = vunpack.c.l.b16 %v379
        %v508 = vunpack.c.l.b16 %v380
        %v509 = vunpack.c.l.b16 %v381
        %v510 = vunpack.c.l.b16 %v382
        %v511 = vunpack.c.l.b16 %v383
        %v512 = vunpack.c.l.b16 %v384
        %v513 = vunpack.c.l.b16 %v385
        %v514 = vunpack.c.l.b16 %v386
        %v515 = vunpack.c.l.b16 %v387
        %v516 = vpack.c.b16 %v501, %v500
        %v517 = vpack.c.b16 %v503, %v502
        %v518 = vpack.c.b16 %v505, %v504
        %v519 = vpack.c.b16 %v507, %v506
        %v520 = vpack.c.b16 %v509, %v508
        %v521 = vpack.c.b16 %v511, %v510
        %v522 = vpack.c.b16 %v513, %v512
        %v523 = vpack.c.b16 %v515, %v514
        %v528 = vunpack.c.l.b16 %v368
        %v529 = vunpack.c.h.b16 %v368
        %v530 = vunpack.c.l.b16 %v369
        %v531 = vunpack.c.h.b16 %v369
        %v532 = vunpack.c.l.b16 %v370
        %v533 = vunpack.c.h.b16 %v370
        %v534 = vunpack.c.l.b16 %v371
        %v535 = vunpack.c.h.b16 %v371
        %v536 = vpack.c.b16 %v530, %v528
        %v537 = vpack.c.b16 %v531, %v529
        %v538 = vpack.c.b16 %v534, %v532
        %v539 = vpack.c.b16 %v535, %v533
        %vm544 = vcmask 261120
        %v546 = vsel %vm544, %v516, 0
        %v549 = vsel %vm544, %v517, 0
        %v552 = vsel %vm544, %v518, 0
        %v555 = vsel %vm544, %v519, 0
        %v558 = vsel %vm544, %v520, 0
        %v561 = vsel %vm544, %v521, 0
        %v564 = vsel %vm544, %v522, 0
        %v567 = vsel %vm544, %v523, 0
        %569 = vmatprep.subr.bf16.mxu0 %v537
        %570 = vmatpush1.bf16.msra.mxu0 %v536
        %571 = vmatprep.subr.bf16.mxu0 %v539
        %572 = vmatpush1.bf16.msra.mxu0 %v538
        %573 = vmatprep.subr.bf16.mxu0 0
        %574 = vmatpush1.bf16.msra.mxu0 0
        %575 = vmatprep.subr.bf16.mxu0 0
        %576 = vmatpush1.bf16.msra.mxu0 0
        %577 = vmatprep.subr.bf16.mxu0 0
        %578 = vmatpush1.bf16.msra.mxu0 0
        %579 = vmatprep.subr.bf16.mxu0 0
        %580 = vmatpush1.bf16.msra.mxu0 0
        %581 = vmatprep.subr.bf16.mxu0 0
        %582 = vmatpush1.bf16.msra.mxu0 0
        %583 = vmatprep.subr.bf16.mxu0 0
        %584 = vmatpush1.bf16.msra.mxu0 0
        %585 = vmatprep.subr.bf16.mxu0 0
        %586 = vmatpush1.bf16.msra.mxu0 0
        %587 = vmatprep.subr.bf16.mxu0 0
        %588 = vmatpush1.bf16.msra.mxu0 0
        %589 = vmatprep.subr.bf16.mxu0 0
        %590 = vmatpush1.bf16.msra.mxu0 0
        %591 = vmatprep.subr.bf16.mxu0 0
        %592 = vmatpush1.bf16.msra.mxu0 0
        %593 = vmatprep.subr.bf16.mxu0 0
        %594 = vmatpush1.bf16.msra.mxu0 0
        %595 = vmatprep.subr.bf16.mxu0 0
        %596 = vmatpush1.bf16.msra.mxu0 0
        %597 = vmatprep.subr.bf16.mxu0 0
        %598 = vmatpush1.bf16.msra.mxu0 0
        %599 = vmatprep.subr.bf16.mxu0 0
        %600 = vmatpush1.bf16.msra.mxu0 0
        %601 = vmatprep.mubr.bf16.mxu0 0
        %602 = vmatmul.mubr.bf16.gmra.mrb[0].mxu0 %v546
        %v603 = vpop.f32.mrb[0].mxu0
        %v604 = vadd.f32 %v407, %v603
        %v605 = vpop.f32.mrb[0].mxu0
        %v606 = vadd.f32 %v407, %v605
        %v607 = vpop.f32.mrb[0].mxu0
        %v608 = vadd.f32 %v412, %v607
        %v609 = vpop.f32.mrb[0].mxu0
        %v610 = vadd.f32 %v412, %v609
        %611 = vmatprep.mubr.bf16.mxu0 0
        %612 = vmatmul.mubr.bf16.gmra.mrb[0].mxu0 %v549
        %v613 = vpop.f32.mrb[0].mxu0
        %v614 = vadd.f32 %v417, %v613
        %v615 = vpop.f32.mrb[0].mxu0
        %v616 = vadd.f32 %v417, %v615
        %v617 = vpop.f32.mrb[0].mxu0
        %v618 = vadd.f32 %v422, %v617
        %v619 = vpop.f32.mrb[0].mxu0
        %v620 = vadd.f32 %v422, %v619
        %621 = vmatprep.mubr.bf16.mxu0 0
        %622 = vmatmul.mubr.bf16.gmra.mrb[0].mxu0 %v552
        %v623 = vpop.f32.mrb[0].mxu0
        %v624 = vadd.f32 %v427, %v623
        %v625 = vpop.f32.mrb[0].mxu0
        %v626 = vadd.f32 %v427, %v625
        %v627 = vpop.f32.mrb[0].mxu0
        %v628 = vadd.f32 %v432, %v627
        %v629 = vpop.f32.mrb[0].mxu0
        %v630 = vadd.f32 %v432, %v629
        %631 = vmatprep.mubr.bf16.mxu0 0
        %632 = vmatmul.mubr.bf16.gmra.mrb[0].mxu0 %v555
        %v633 = vpop.f32.mrb[0].mxu0
        %v634 = vadd.f32 %v437, %v633
        %v635 = vpop.f32.mrb[0].mxu0
        %v636 = vadd.f32 %v437, %v635
        %v637 = vpop.f32.mrb[0].mxu0
        %v638 = vadd.f32 %v442, %v637
        %v639 = vpop.f32.mrb[0].mxu0
        %v640 = vadd.f32 %v442, %v639
        %641 = vmatprep.mubr.bf16.mxu0 0
        %642 = vmatmul.mubr.bf16.gmra.mrb[0].mxu0 %v558
        %v643 = vpop.f32.mrb[0].mxu0
        %v644 = vadd.f32 %v447, %v643
        %v645 = vpop.f32.mrb[0].mxu0
        %v646 = vadd.f32 %v447, %v645
        %v647 = vpop.f32.mrb[0].mxu0
        %v648 = vadd.f32 %v452, %v647
        %v649 = vpop.f32.mrb[0].mxu0
        %v650 = vadd.f32 %v452, %v649
        %651 = vmatprep.mubr.bf16.mxu0 0
        %652 = vmatmul.mubr.bf16.gmra.mrb[0].mxu0 %v561
        %v653 = vpop.f32.mrb[0].mxu0
        %v654 = vadd.f32 %v457, %v653
        %v655 = vpop.f32.mrb[0].mxu0
        %v656 = vadd.f32 %v457, %v655
        %v657 = vpop.f32.mrb[0].mxu0
        %v658 = vadd.f32 %v462, %v657
        %v659 = vpop.f32.mrb[0].mxu0
        %v660 = vadd.f32 %v462, %v659
        %661 = vmatprep.mubr.bf16.mxu0 0
        %662 = vmatmul.mubr.bf16.gmra.mrb[0].mxu0 %v564
        %v663 = vpop.f32.mrb[0].mxu0
        %v664 = vadd.f32 %v467, %v663
        %v665 = vpop.f32.mrb[0].mxu0
        %v666 = vadd.f32 %v467, %v665
        %v667 = vpop.f32.mrb[0].mxu0
        %v668 = vadd.f32 %v472, %v667
        %v669 = vpop.f32.mrb[0].mxu0
        %v670 = vadd.f32 %v472, %v669
        %671 = vmatprep.mubr.bf16.mxu0 0
        %672 = vmatmul.mubr.bf16.gmra.mrb[0].mxu0 %v567
        %v673 = vpop.f32.mrb[0].mxu0
        %v674 = vadd.f32 %v477, %v673
        %v675 = vpop.f32.mrb[0].mxu0
        %v676 = vadd.f32 %v477, %v675
        %v677 = vpop.f32.mrb[0].mxu0
        %v678 = vadd.f32 %v482, %v677
        %v679 = vpop.f32.mrb[0].mxu0
        %v680 = vadd.f32 %v482, %v679
        %681 = vdwg.mxu0
        %v682 = vmax.f32 %v604, 0.0
        %v683 = vmax.f32 %v606, 0.0
        %v684 = vmax.f32 %v608, 0.0
        %v685 = vmax.f32 %v610, 0.0
        %v686 = vmax.f32 %v614, 0.0
        %v687 = vmax.f32 %v616, 0.0
        %v688 = vmax.f32 %v618, 0.0
        %v689 = vmax.f32 %v620, 0.0
        %v690 = vmax.f32 %v624, 0.0
        %v691 = vmax.f32 %v626, 0.0
        %v692 = vmax.f32 %v628, 0.0
        %v693 = vmax.f32 %v630, 0.0
        %v694 = vmax.f32 %v634, 0.0
        %v695 = vmax.f32 %v636, 0.0
        %v696 = vmax.f32 %v638, 0.0
        %v697 = vmax.f32 %v640, 0.0
        %v698 = vmax.f32 %v644, 0.0
        %v699 = vmax.f32 %v646, 0.0
        %v700 = vmax.f32 %v648, 0.0
        %v701 = vmax.f32 %v650, 0.0
        %v702 = vmax.f32 %v654, 0.0
        %v703 = vmax.f32 %v656, 0.0
        %v704 = vmax.f32 %v658, 0.0
        %v705 = vmax.f32 %v660, 0.0
        %v706 = vmax.f32 %v664, 0.0
        %v707 = vmax.f32 %v666, 0.0
        %v708 = vmax.f32 %v668, 0.0
        %v709 = vmax.f32 %v670, 0.0
        %v710 = vmax.f32 %v674, 0.0
        %v711 = vmax.f32 %v676, 0.0
        %v712 = vmax.f32 %v678, 0.0
        %v713 = vmax.f32 %v680, 0.0
        %v714 = vmin.f32 %v682, 6.0
        %v715 = vmin.f32 %v683, 6.0
        %v716 = vmin.f32 %v684, 6.0
        %v717 = vmin.f32 %v685, 6.0
        %v718 = vmin.f32 %v686, 6.0
        %v719 = vmin.f32 %v687, 6.0
        %v720 = vmin.f32 %v688, 6.0
        %v721 = vmin.f32 %v689, 6.0
        %v722 = vmin.f32 %v690, 6.0
        %v723 = vmin.f32 %v691, 6.0
        %v724 = vmin.f32 %v692, 6.0
        %v725 = vmin.f32 %v693, 6.0
        %v726 = vmin.f32 %v694, 6.0
        %v727 = vmin.f32 %v695, 6.0
        %v728 = vmin.f32 %v696, 6.0
        %v729 = vmin.f32 %v697, 6.0
        %v730 = vmin.f32 %v698, 6.0
        %v731 = vmin.f32 %v699, 6.0
        %v732 = vmin.f32 %v700, 6.0
        %v733 = vmin.f32 %v701, 6.0
        %v734 = vmin.f32 %v702, 6.0
        %v735 = vmin.f32 %v703, 6.0
        %v736 = vmin.f32 %v704, 6.0
        %v737 = vmin.f32 %v705, 6.0
        %v738 = vmin.f32 %v706, 6.0
        %v739 = vmin.f32 %v707, 6.0
        %v740 = vmin.f32 %v708, 6.0
        %v741 = vmin.f32 %v709, 6.0
        %v742 = vmin.f32 %v710, 6.0
        %v743 = vmin.f32 %v711, 6.0
        %v744 = vmin.f32 %v712, 6.0
        %v745 = vmin.f32 %v713, 6.0
        %v746 = vld [vmem:[%s361] sm:$0x3]
        %v748 = vlaneseq
        %v749 = vshrl.u32 %v748, 7
        %v750 = vsub.s32 0, %v749
        %v751 = vrot.slane %v746, %v750
        %v752 = vlaneseq
        %v753 = vshrl.u32 %v752, 7
        %v754 = vsub.s32 1, %v753
        %v755 = vrot.slane %v746, %v754
        %v758 = vmul.f32 %v714, %v751
        %v759 = vmul.f32 %v715, %v755
        %v760 = vmul.f32 %v716, %v751
        %v761 = vmul.f32 %v717, %v755
        %v762 = vmul.f32 %v718, %v751
        %v763 = vmul.f32 %v719, %v755
        %v764 = vmul.f32 %v720, %v751
        %v765 = vmul.f32 %v721, %v755
        %v766 = vmul.f32 %v722, %v751
        %v767 = vmul.f32 %v723, %v755
        %v768 = vmul.f32 %v724, %v751
        %v769 = vmul.f32 %v725, %v755
        %v770 = vmul.f32 %v726, %v751
        %v771 = vmul.f32 %v727, %v755
        %v772 = vmul.f32 %v728, %v751
        %v773 = vmul.f32 %v729, %v755
        %v774 = vmul.f32 %v730, %v751
        %v775 = vmul.f32 %v731, %v755
        %v776 = vmul.f32 %v732, %v751
        %v777 = vmul.f32 %v733, %v755
        %v778 = vmul.f32 %v734, %v751
        %v779 = vmul.f32 %v735, %v755
        %v780 = vmul.f32 %v736, %v751
        %v781 = vmul.f32 %v737, %v755
        %v782 = vmul.f32 %v738, %v751
        %v783 = vmul.f32 %v739, %v755
        %v784 = vmul.f32 %v740, %v751
        %v785 = vmul.f32 %v741, %v755
        %v786 = vmul.f32 %v742, %v751
        %v787 = vmul.f32 %v743, %v755
        %v788 = vmul.f32 %v744, %v751
        %v789 = vmul.f32 %v745, %v755
        %v790 = vld [vmem:[%s3] sm:$0xff]
        %v791 = vld [vmem:[%s3 + $0x8] sm:$0xff]
        %v792 = vld [vmem:[%s3 + $0x10] sm:$0xff]
        %v793 = vld [vmem:[%s3 + $0x18] sm:$0xff]
        %v794 = vld [vmem:[%s3 + $0x20] sm:$0xff]
        %v795 = vld [vmem:[%s3 + $0x28] sm:$0xff]
        %v796 = vld [vmem:[%s3 + $0x30] sm:$0xff]
        %v797 = vld [vmem:[%s3 + $0x38] sm:$0xff]
        %v798 = vld [vmem:[%s3 + $0x40] sm:$0xff]
        %v799 = vld [vmem:[%s3 + $0x48] sm:$0xff]
        %v800 = vld [vmem:[%s3 + $0x50] sm:$0xff]
        %v801 = vld [vmem:[%s3 + $0x58] sm:$0xff]
        %v802 = vld [vmem:[%s3 + $0x60] sm:$0xff]
        %v803 = vld [vmem:[%s3 + $0x68] sm:$0xff]
        %v804 = vld [vmem:[%s3 + $0x70] sm:$0xff]
        %v805 = vld [vmem:[%s3 + $0x78] sm:$0xff]
        %v806 = vld [vmem:[%s7] sm:$0x1]
        %v807 = vld [vmem:[%s7 + $0x1] sm:$0x1]
        %808 = vrot.lane.b32.xlu0 %v758, 1
        %v809 = vpop.permute.xlu0 %808
        %810 = vrot.lane.b32.xlu0 %v760, 1
        %v811 = vpop.permute.xlu0 %810
        %812 = vrot.lane.b32.xlu0 %v762, 1
        %v813 = vpop.permute.xlu0 %812
        %814 = vrot.lane.b32.xlu0 %v764, 1
        %v815 = vpop.permute.xlu0 %814
        %816 = vrot.lane.b32.xlu0 %v766, 1
        %v817 = vpop.permute.xlu0 %816
        %818 = vrot.lane.b32.xlu0 %v768, 1
        %v819 = vpop.permute.xlu0 %818
        %820 = vrot.lane.b32.xlu0 %v770, 1
        %v821 = vpop.permute.xlu0 %820
        %822 = vrot.lane.b32.xlu0 %v772, 1
        %v823 = vpop.permute.xlu0 %822
        %824 = vrot.lane.b32.xlu0 %v774, 1
        %v825 = vpop.permute.xlu0 %824
        %826 = vrot.lane.b32.xlu0 %v776, 1
        %v827 = vpop.permute.xlu0 %826
        %828 = vrot.lane.b32.xlu0 %v778, 1
        %v829 = vpop.permute.xlu0 %828
        %830 = vrot.lane.b32.xlu0 %v780, 1
        %v831 = vpop.permute.xlu0 %830
        %832 = vrot.lane.b32.xlu0 %v782, 1
        %v833 = vpop.permute.xlu0 %832
        %834 = vrot.lane.b32.xlu0 %v784, 1
        %v835 = vpop.permute.xlu0 %834
        %836 = vrot.lane.b32.xlu0 %v786, 1
        %v837 = vpop.permute.xlu0 %836
        %838 = vrot.lane.b32.xlu0 %v788, 1
        %v839 = vpop.permute.xlu0 %838
        %840 = vrot.lane.b32.xlu0 %v759, 1
        %v841 = vpop.permute.xlu0 %840
        %842 = vrot.lane.b32.xlu0 %v761, 1
        %v843 = vpop.permute.xlu0 %842
        %844 = vrot.lane.b32.xlu0 %v763, 1
        %v845 = vpop.permute.xlu0 %844
        %846 = vrot.lane.b32.xlu0 %v765, 1
        %v847 = vpop.permute.xlu0 %846
        %848 = vrot.lane.b32.xlu0 %v767, 1
        %v849 = vpop.permute.xlu0 %848
        %850 = vrot.lane.b32.xlu0 %v769, 1
        %v851 = vpop.permute.xlu0 %850
        %852 = vrot.lane.b32.xlu0 %v771, 1
        %v853 = vpop.permute.xlu0 %852
        %854 = vrot.lane.b32.xlu0 %v773, 1
        %v855 = vpop.permute.xlu0 %854
        %856 = vrot.lane.b32.xlu0 %v775, 1
        %v857 = vpop.permute.xlu0 %856
        %858 = vrot.lane.b32.xlu0 %v777, 1
        %v859 = vpop.permute.xlu0 %858
        %860 = vrot.lane.b32.xlu0 %v779, 1
        %v861 = vpop.permute.xlu0 %860
        %862 = vrot.lane.b32.xlu0 %v781, 1
        %v863 = vpop.permute.xlu0 %862
        %864 = vrot.lane.b32.xlu0 %v783, 1
        %v865 = vpop.permute.xlu0 %864
        %866 = vrot.lane.b32.xlu0 %v785, 1
        %v867 = vpop.permute.xlu0 %866
        %868 = vrot.lane.b32.xlu0 %v787, 1
        %v869 = vpop.permute.xlu0 %868
        %870 = vrot.lane.b32.xlu0 %v789, 1
        %v871 = vpop.permute.xlu0 %870
        %v872 = vlaneseq
        %v873 = vand.u32 %v872, 127
        %vm874 = vcmp.lt.s32.totalorder %v873, 1
        %v875 = vsel %vm874, %v841, %v809
        %v876 = vsel %vm874, %v843, %v811
        %v877 = vsel %vm874, %v845, %v813
        %v878 = vsel %vm874, %v847, %v815
        %v879 = vsel %vm874, %v849, %v817
        %v880 = vsel %vm874, %v851, %v819
        %v881 = vsel %vm874, %v853, %v821
        %v882 = vsel %vm874, %v855, %v823
        %v883 = vsel %vm874, %v857, %v825
        %v884 = vsel %vm874, %v859, %v827
        %v885 = vsel %vm874, %v861, %v829
        %v886 = vsel %vm874, %v863, %v831
        %v887 = vsel %vm874, %v865, %v833
        %v888 = vsel %vm874, %v867, %v835
        %v889 = vsel %vm874, %v869, %v837
        %v890 = vsel %vm874, %v871, %v839
        %892 = vset.pattern.permute.xlu0 0
        %893 = vperm.xlu0 %892, %v790
        %v894 = vpop.permute.xlu0 %893
        %897 = vset.pattern.permute.xlu0 0
        %898 = vperm.xlu0 %897, %v791
        %v899 = vpop.permute.xlu0 %898
        %902 = vset.pattern.permute.xlu0 0
        %903 = vperm.xlu0 %902, %v792
        %v904 = vpop.permute.xlu0 %903
        %907 = vset.pattern.permute.xlu0 0
        %908 = vperm.xlu0 %907, %v793
        %v909 = vpop.permute.xlu0 %908
        %912 = vset.pattern.permute.xlu0 0
        %913 = vperm.xlu0 %912, %v794
        %v914 = vpop.permute.xlu0 %913
        %917 = vset.pattern.permute.xlu0 0
        %918 = vperm.xlu0 %917, %v795
        %v919 = vpop.permute.xlu0 %918
        %922 = vset.pattern.permute.xlu0 0
        %923 = vperm.xlu0 %922, %v796
        %v924 = vpop.permute.xlu0 %923
        %927 = vset.pattern.permute.xlu0 0
        %928 = vperm.xlu0 %927, %v797
        %v929 = vpop.permute.xlu0 %928
        %932 = vset.pattern.permute.xlu0 0
        %933 = vperm.xlu0 %932, %v798
        %v934 = vpop.permute.xlu0 %933
        %937 = vset.pattern.permute.xlu0 0
        %938 = vperm.xlu0 %937, %v799
        %v939 = vpop.permute.xlu0 %938
        %942 = vset.pattern.permute.xlu0 0
        %943 = vperm.xlu0 %942, %v800
        %v944 = vpop.permute.xlu0 %943
        %947 = vset.pattern.permute.xlu0 0
        %948 = vperm.xlu0 %947, %v801
        %v949 = vpop.permute.xlu0 %948
        %952 = vset.pattern.permute.xlu0 0
        %953 = vperm.xlu0 %952, %v802
        %v954 = vpop.permute.xlu0 %953
        %957 = vset.pattern.permute.xlu0 0
        %958 = vperm.xlu0 %957, %v803
        %v959 = vpop.permute.xlu0 %958
        %962 = vset.pattern.permute.xlu0 0
        %963 = vperm.xlu0 %962, %v804
        %v964 = vpop.permute.xlu0 %963
        %967 = vset.pattern.permute.xlu0 0
        %968 = vperm.xlu0 %967, %v805
        %v969 = vpop.permute.xlu0 %968
        %v971 = vmul.f32 %v875, %v894
        %v972 = vmul.f32 %v876, %v899
        %v973 = vmul.f32 %v877, %v904
        %v974 = vmul.f32 %v878, %v909
        %v975 = vmul.f32 %v879, %v914
        %v976 = vmul.f32 %v880, %v919
        %v977 = vmul.f32 %v881, %v924
        %v978 = vmul.f32 %v882, %v929
        %v979 = vmul.f32 %v883, %v934
        %v980 = vmul.f32 %v884, %v939
        %v981 = vmul.f32 %v885, %v944
        %v982 = vmul.f32 %v886, %v949
        %v983 = vmul.f32 %v887, %v954
        %v984 = vmul.f32 %v888, %v959
        %v985 = vmul.f32 %v889, %v964
        %v986 = vmul.f32 %v890, %v969
        %987 = vrot.lane.b32.xlu0 %v758, 113
        %v988 = vpop.permute.xlu0 %987
        %989 = vrot.lane.b32.xlu0 %v760, 113
        %v990 = vpop.permute.xlu0 %989
        %991 = vrot.lane.b32.xlu0 %v762, 113
        %v992 = vpop.permute.xlu0 %991
        %993 = vrot.lane.b32.xlu0 %v764, 113
        %v994 = vpop.permute.xlu0 %993
        %995 = vrot.lane.b32.xlu0 %v766, 113
        %v996 = vpop.permute.xlu0 %995
        %997 = vrot.lane.b32.xlu0 %v768, 113
        %v998 = vpop.permute.xlu0 %997
        %999 = vrot.lane.b32.xlu0 %v770, 113
        %v1000 = vpop.permute.xlu0 %999
        %1001 = vrot.lane.b32.xlu0 %v772, 113
        %v1002 = vpop.permute.xlu0 %1001
        %1003 = vrot.lane.b32.xlu0 %v774, 113
        %v1004 = vpop.permute.xlu0 %1003
        %1005 = vrot.lane.b32.xlu0 %v776, 113
        %v1006 = vpop.permute.xlu0 %1005
        %1007 = vrot.lane.b32.xlu0 %v778, 113
        %v1008 = vpop.permute.xlu0 %1007
        %1009 = vrot.lane.b32.xlu0 %v780, 113
        %v1010 = vpop.permute.xlu0 %1009
        %1011 = vrot.lane.b32.xlu0 %v782, 113
        %v1012 = vpop.permute.xlu0 %1011
        %1013 = vrot.lane.b32.xlu0 %v784, 113
        %v1014 = vpop.permute.xlu0 %1013
        %1015 = vrot.lane.b32.xlu0 %v786, 113
        %v1016 = vpop.permute.xlu0 %1015
        %1017 = vrot.lane.b32.xlu0 %v788, 113
        %v1018 = vpop.permute.xlu0 %1017
        %1019 = vrot.lane.b32.xlu0 %v759, 113
        %v1020 = vpop.permute.xlu0 %1019
        %1021 = vrot.lane.b32.xlu0 %v761, 113
        %v1022 = vpop.permute.xlu0 %1021
        %1023 = vrot.lane.b32.xlu0 %v763, 113
        %v1024 = vpop.permute.xlu0 %1023
        %1025 = vrot.lane.b32.xlu0 %v765, 113
        %v1026 = vpop.permute.xlu0 %1025
        %1027 = vrot.lane.b32.xlu0 %v767, 113
        %v1028 = vpop.permute.xlu0 %1027
        %1029 = vrot.lane.b32.xlu0 %v769, 113
        %v1030 = vpop.permute.xlu0 %1029
        %1031 = vrot.lane.b32.xlu0 %v771, 113
        %v1032 = vpop.permute.xlu0 %1031
        %1033 = vrot.lane.b32.xlu0 %v773, 113
        %v1034 = vpop.permute.xlu0 %1033
        %1035 = vrot.lane.b32.xlu0 %v775, 113
        %v1036 = vpop.permute.xlu0 %1035
        %1037 = vrot.lane.b32.xlu0 %v777, 113
        %v1038 = vpop.permute.xlu0 %1037
        %1039 = vrot.lane.b32.xlu0 %v779, 113
        %v1040 = vpop.permute.xlu0 %1039
        %1041 = vrot.lane.b32.xlu0 %v781, 113
        %v1042 = vpop.permute.xlu0 %1041
        %1043 = vrot.lane.b32.xlu0 %v783, 113
        %v1044 = vpop.permute.xlu0 %1043
        %1045 = vrot.lane.b32.xlu0 %v785, 113
        %v1046 = vpop.permute.xlu0 %1045
        %1047 = vrot.lane.b32.xlu0 %v787, 113
        %v1048 = vpop.permute.xlu0 %1047
        %1049 = vrot.lane.b32.xlu0 %v789, 113
        %v1050 = vpop.permute.xlu0 %1049
        %vm1051 = vcmp.lt.s32.totalorder %v873, 113
        %v1052 = vsel %vm1051, %v988, %v1020
        %v1053 = vsel %vm1051, %v990, %v1022
        %v1054 = vsel %vm1051, %v992, %v1024
        %v1055 = vsel %vm1051, %v994, %v1026
        %v1056 = vsel %vm1051, %v996, %v1028
        %v1057 = vsel %vm1051, %v998, %v1030
        %v1058 = vsel %vm1051, %v1000, %v1032
        %v1059 = vsel %vm1051, %v1002, %v1034
        %v1060 = vsel %vm1051, %v1004, %v1036
        %v1061 = vsel %vm1051, %v1006, %v1038
        %v1062 = vsel %vm1051, %v1008, %v1040
        %v1063 = vsel %vm1051, %v1010, %v1042
        %v1064 = vsel %vm1051, %v1012, %v1044
        %v1065 = vsel %vm1051, %v1014, %v1046
        %v1066 = vsel %vm1051, %v1016, %v1048
        %v1067 = vsel %vm1051, %v1018, %v1050
        %1068 = vset.pattern.permute.xlu0 3
        %1069 = vperm.xlu0 %1068, %v790
        %v1070 = vpop.permute.xlu0 %1069
        %1072 = vset.pattern.permute.xlu0 3
        %1073 = vperm.xlu0 %1072, %v791
        %v1074 = vpop.permute.xlu0 %1073
        %1076 = vset.pattern.permute.xlu0 3
        %1077 = vperm.xlu0 %1076, %v792
        %v1078 = vpop.permute.xlu0 %1077
        %1080 = vset.pattern.permute.xlu0 3
        %1081 = vperm.xlu0 %1080, %v793
        %v1082 = vpop.permute.xlu0 %1081
        %1084 = vset.pattern.permute.xlu0 3
        %1085 = vperm.xlu0 %1084, %v794
        %v1086 = vpop.permute.xlu0 %1085
        %1088 = vset.pattern.permute.xlu0 3
        %1089 = vperm.xlu0 %1088, %v795
        %v1090 = vpop.permute.xlu0 %1089
        %1092 = vset.pattern.permute.xlu0 3
        %1093 = vperm.xlu0 %1092, %v796
        %v1094 = vpop.permute.xlu0 %1093
        %1096 = vset.pattern.permute.xlu0 3
        %1097 = vperm.xlu0 %1096, %v797
        %v1098 = vpop.permute.xlu0 %1097
        %1100 = vset.pattern.permute.xlu0 3
        %1101 = vperm.xlu0 %1100, %v798
        %v1102 = vpop.permute.xlu0 %1101
        %1104 = vset.pattern.permute.xlu0 3
        %1105 = vperm.xlu0 %1104, %v799
        %v1106 = vpop.permute.xlu0 %1105
        %1108 = vset.pattern.permute.xlu0 3
        %1109 = vperm.xlu0 %1108, %v800
        %v1110 = vpop.permute.xlu0 %1109
        %1112 = vset.pattern.permute.xlu0 3
        %1113 = vperm.xlu0 %1112, %v801
        %v1114 = vpop.permute.xlu0 %1113
        %1116 = vset.pattern.permute.xlu0 3
        %1117 = vperm.xlu0 %1116, %v802
        %v1118 = vpop.permute.xlu0 %1117
        %1120 = vset.pattern.permute.xlu0 3
        %1121 = vperm.xlu0 %1120, %v803
        %v1122 = vpop.permute.xlu0 %1121
        %1124 = vset.pattern.permute.xlu0 3
        %1125 = vperm.xlu0 %1124, %v804
        %v1126 = vpop.permute.xlu0 %1125
        %1128 = vset.pattern.permute.xlu0 3
        %1129 = vperm.xlu0 %1128, %v805
        %v1130 = vpop.permute.xlu0 %1129
        %v1132 = vmul.f32 %v1052, %v1070
        %v1133 = vmul.f32 %v1053, %v1074
        %v1134 = vmul.f32 %v1054, %v1078
        %v1135 = vmul.f32 %v1055, %v1082
        %v1136 = vmul.f32 %v1056, %v1086
        %v1137 = vmul.f32 %v1057, %v1090
        %v1138 = vmul.f32 %v1058, %v1094
        %v1139 = vmul.f32 %v1059, %v1098
        %v1140 = vmul.f32 %v1060, %v1102
        %v1141 = vmul.f32 %v1061, %v1106
        %v1142 = vmul.f32 %v1062, %v1110
        %v1143 = vmul.f32 %v1063, %v1114
        %v1144 = vmul.f32 %v1064, %v1118
        %v1145 = vmul.f32 %v1065, %v1122
        %v1146 = vmul.f32 %v1066, %v1126
        %v1147 = vmul.f32 %v1067, %v1130
        %v1148 = vadd.f32 %v971, %v1132
        %v1149 = vadd.f32 %v972, %v1133
        %v1150 = vadd.f32 %v973, %v1134
        %v1151 = vadd.f32 %v974, %v1135
        %v1152 = vadd.f32 %v975, %v1136
        %v1153 = vadd.f32 %v976, %v1137
        %v1154 = vadd.f32 %v977, %v1138
        %v1155 = vadd.f32 %v978, %v1139
        %v1156 = vadd.f32 %v979, %v1140
        %v1157 = vadd.f32 %v980, %v1141
        %v1158 = vadd.f32 %v981, %v1142
        %v1159 = vadd.f32 %v982, %v1143
        %v1160 = vadd.f32 %v983, %v1144
        %v1161 = vadd.f32 %v984, %v1145
        %v1162 = vadd.f32 %v985, %v1146
        %v1163 = vadd.f32 %v986, %v1147
        %1164 = vrot.lane.b32.xlu0 %v758, 97
        %v1165 = vpop.permute.xlu0 %1164
        %1166 = vrot.lane.b32.xlu0 %v760, 97
        %v1167 = vpop.permute.xlu0 %1166
        %1168 = vrot.lane.b32.xlu0 %v762, 97
        %v1169 = vpop.permute.xlu0 %1168
        %1170 = vrot.lane.b32.xlu0 %v764, 97
        %v1171 = vpop.permute.xlu0 %1170
        %1172 = vrot.lane.b32.xlu0 %v766, 97
        %v1173 = vpop.permute.xlu0 %1172
        %1174 = vrot.lane.b32.xlu0 %v768, 97
        %v1175 = vpop.permute.xlu0 %1174
        %1176 = vrot.lane.b32.xlu0 %v770, 97
        %v1177 = vpop.permute.xlu0 %1176
        %1178 = vrot.lane.b32.xlu0 %v772, 97
        %v1179 = vpop.permute.xlu0 %1178
        %1180 = vrot.lane.b32.xlu0 %v774, 97
        %v1181 = vpop.permute.xlu0 %1180
        %1182 = vrot.lane.b32.xlu0 %v776, 97
        %v1183 = vpop.permute.xlu0 %1182
        %1184 = vrot.lane.b32.xlu0 %v778, 97
        %v1185 = vpop.permute.xlu0 %1184
        %1186 = vrot.lane.b32.xlu0 %v780, 97
        %v1187 = vpop.permute.xlu0 %1186
        %1188 = vrot.lane.b32.xlu0 %v782, 97
        %v1189 = vpop.permute.xlu0 %1188
        %1190 = vrot.lane.b32.xlu0 %v784, 97
        %v1191 = vpop.permute.xlu0 %1190
        %1192 = vrot.lane.b32.xlu0 %v786, 97
        %v1193 = vpop.permute.xlu0 %1192
        %1194 = vrot.lane.b32.xlu0 %v788, 97
        %v1195 = vpop.permute.xlu0 %1194
        %1196 = vrot.lane.b32.xlu0 %v759, 97
        %v1197 = vpop.permute.xlu0 %1196
        %1198 = vrot.lane.b32.xlu0 %v761, 97
        %v1199 = vpop.permute.xlu0 %1198
        %1200 = vrot.lane.b32.xlu0 %v763, 97
        %v1201 = vpop.permute.xlu0 %1200
        %1202 = vrot.lane.b32.xlu0 %v765, 97
        %v1203 = vpop.permute.xlu0 %1202
        %1204 = vrot.lane.b32.xlu0 %v767, 97
        %v1205 = vpop.permute.xlu0 %1204
        %1206 = vrot.lane.b32.xlu0 %v769, 97
        %v1207 = vpop.permute.xlu0 %1206
        %1208 = vrot.lane.b32.xlu0 %v771, 97
        %v1209 = vpop.permute.xlu0 %1208
        %1210 = vrot.lane.b32.xlu0 %v773, 97
        %v1211 = vpop.permute.xlu0 %1210
        %1212 = vrot.lane.b32.xlu0 %v775, 97
        %v1213 = vpop.permute.xlu0 %1212
        %1214 = vrot.lane.b32.xlu0 %v777, 97
        %v1215 = vpop.permute.xlu0 %1214
        %1216 = vrot.lane.b32.xlu0 %v779, 97
        %v1217 = vpop.permute.xlu0 %1216
        %1218 = vrot.lane.b32.xlu0 %v781, 97
        %v1219 = vpop.permute.xlu0 %1218
        %1220 = vrot.lane.b32.xlu0 %v783, 97
        %v1221 = vpop.permute.xlu0 %1220
        %1222 = vrot.lane.b32.xlu0 %v785, 97
        %v1223 = vpop.permute.xlu0 %1222
        %1224 = vrot.lane.b32.xlu0 %v787, 97
        %v1225 = vpop.permute.xlu0 %1224
        %1226 = vrot.lane.b32.xlu0 %v789, 97
        %v1227 = vpop.permute.xlu0 %1226
        %vm1228 = vcmp.lt.s32.totalorder %v873, 97
        %v1229 = vsel %vm1228, %v1165, %v1197
        %v1230 = vsel %vm1228, %v1167, %v1199
        %v1231 = vsel %vm1228, %v1169, %v1201
        %v1232 = vsel %vm1228, %v1171, %v1203
        %v1233 = vsel %vm1228, %v1173, %v1205
        %v1234 = vsel %vm1228, %v1175, %v1207
        %v1235 = vsel %vm1228, %v1177, %v1209
        %v1236 = vsel %vm1228, %v1179, %v1211
        %v1237 = vsel %vm1228, %v1181, %v1213
        %v1238 = vsel %vm1228, %v1183, %v1215
        %v1239 = vsel %vm1228, %v1185, %v1217
        %v1240 = vsel %vm1228, %v1187, %v1219
        %v1241 = vsel %vm1228, %v1189, %v1221
        %v1242 = vsel %vm1228, %v1191, %v1223
        %v1243 = vsel %vm1228, %v1193, %v1225
        %v1244 = vsel %vm1228, %v1195, %v1227
        %1245 = vset.pattern.permute.xlu0 6
        %1246 = vperm.xlu0 %1245, %v790
        %v1247 = vpop.permute.xlu0 %1246
        %1249 = vset.pattern.permute.xlu0 6
        %1250 = vperm.xlu0 %1249, %v791
        %v1251 = vpop.permute.xlu0 %1250
        %1253 = vset.pattern.permute.xlu0 6
        %1254 = vperm.xlu0 %1253, %v792
        %v1255 = vpop.permute.xlu0 %1254
        %1257 = vset.pattern.permute.xlu0 6
        %1258 = vperm.xlu0 %1257, %v793
        %v1259 = vpop.permute.xlu0 %1258
        %1261 = vset.pattern.permute.xlu0 6
        %1262 = vperm.xlu0 %1261, %v794
        %v1263 = vpop.permute.xlu0 %1262
        %1265 = vset.pattern.permute.xlu0 6
        %1266 = vperm.xlu0 %1265, %v795
        %v1267 = vpop.permute.xlu0 %1266
        %1269 = vset.pattern.permute.xlu0 6
        %1270 = vperm.xlu0 %1269, %v796
        %v1271 = vpop.permute.xlu0 %1270
        %1273 = vset.pattern.permute.xlu0 6
        %1274 = vperm.xlu0 %1273, %v797
        %v1275 = vpop.permute.xlu0 %1274
        %1277 = vset.pattern.permute.xlu0 6
        %1278 = vperm.xlu0 %1277, %v798
        %v1279 = vpop.permute.xlu0 %1278
        %1281 = vset.pattern.permute.xlu0 6
        %1282 = vperm.xlu0 %1281, %v799
        %v1283 = vpop.permute.xlu0 %1282
        %1285 = vset.pattern.permute.xlu0 6
        %1286 = vperm.xlu0 %1285, %v800
        %v1287 = vpop.permute.xlu0 %1286
        %1289 = vset.pattern.permute.xlu0 6
        %1290 = vperm.xlu0 %1289, %v801
        %v1291 = vpop.permute.xlu0 %1290
        %1293 = vset.pattern.permute.xlu0 6
        %1294 = vperm.xlu0 %1293, %v802
        %v1295 = vpop.permute.xlu0 %1294
        %1297 = vset.pattern.permute.xlu0 6
        %1298 = vperm.xlu0 %1297, %v803
        %v1299 = vpop.permute.xlu0 %1298
        %1301 = vset.pattern.permute.xlu0 6
        %1302 = vperm.xlu0 %1301, %v804
        %v1303 = vpop.permute.xlu0 %1302
        %1305 = vset.pattern.permute.xlu0 6
        %1306 = vperm.xlu0 %1305, %v805
        %v1307 = vpop.permute.xlu0 %1306
        %v1309 = vmul.f32 %v1229, %v1247
        %v1310 = vmul.f32 %v1230, %v1251
        %v1311 = vmul.f32 %v1231, %v1255
        %v1312 = vmul.f32 %v1232, %v1259
        %v1313 = vmul.f32 %v1233, %v1263
        %v1314 = vmul.f32 %v1234, %v1267
        %v1315 = vmul.f32 %v1235, %v1271
        %v1316 = vmul.f32 %v1236, %v1275
        %v1317 = vmul.f32 %v1237, %v1279
        %v1318 = vmul.f32 %v1238, %v1283
        %v1319 = vmul.f32 %v1239, %v1287
        %v1320 = vmul.f32 %v1240, %v1291
        %v1321 = vmul.f32 %v1241, %v1295
        %v1322 = vmul.f32 %v1242, %v1299
        %v1323 = vmul.f32 %v1243, %v1303
        %v1324 = vmul.f32 %v1244, %v1307
        %v1325 = vadd.f32 %v1148, %v1309
        %v1326 = vadd.f32 %v1149, %v1310
        %v1327 = vadd.f32 %v1150, %v1311
        %v1328 = vadd.f32 %v1151, %v1312
        %v1329 = vadd.f32 %v1152, %v1313
        %v1330 = vadd.f32 %v1153, %v1314
        %v1331 = vadd.f32 %v1154, %v1315
        %v1332 = vadd.f32 %v1155, %v1316
        %v1333 = vadd.f32 %v1156, %v1317
        %v1334 = vadd.f32 %v1157, %v1318
        %v1335 = vadd.f32 %v1158, %v1319
        %v1336 = vadd.f32 %v1159, %v1320
        %v1337 = vadd.f32 %v1160, %v1321
        %v1338 = vadd.f32 %v1161, %v1322
        %v1339 = vadd.f32 %v1162, %v1323
        %v1340 = vadd.f32 %v1163, %v1324
        %v1341 = vlaneseq
        %v1342 = vshrl.u32 %v1341, 7
        %v1343 = vsub.s32 0, %v1342
        %v1344 = vrot.slane %v806, %v1343
        %v1345 = vmul.f32 %v1325, %v1344
        %v1346 = vmul.f32 %v1326, %v1344
        %v1347 = vmul.f32 %v1327, %v1344
        %v1348 = vmul.f32 %v1328, %v1344
        %v1349 = vmul.f32 %v1329, %v1344
        %v1350 = vmul.f32 %v1330, %v1344
        %v1351 = vmul.f32 %v1331, %v1344
        %v1352 = vmul.f32 %v1332, %v1344
        %v1353 = vmul.f32 %v1333, %v1344
        %v1354 = vmul.f32 %v1334, %v1344
        %v1355 = vmul.f32 %v1335, %v1344
        %v1356 = vmul.f32 %v1336, %v1344
        %v1357 = vmul.f32 %v1337, %v1344
        %v1358 = vmul.f32 %v1338, %v1344
        %v1359 = vmul.f32 %v1339, %v1344
        %v1360 = vmul.f32 %v1340, %v1344
        %v1361 = vadd.f32 %v1345, 0.0
        %v1362 = vadd.f32 %v1346, 0.0
        %v1363 = vadd.f32 %v1347, 0.0
        %v1364 = vadd.f32 %v1348, 0.0
        %v1365 = vadd.f32 %v1349, 0.0
        %v1366 = vadd.f32 %v1350, 0.0
        %v1367 = vadd.f32 %v1351, 0.0
        %v1368 = vadd.f32 %v1352, 0.0
        %v1369 = vadd.f32 %v1353, 0.0
        %v1370 = vadd.f32 %v1354, 0.0
        %v1371 = vadd.f32 %v1355, 0.0
        %v1372 = vadd.f32 %v1356, 0.0
        %v1373 = vadd.f32 %v1357, 0.0
        %v1374 = vadd.f32 %v1358, 0.0
        %v1375 = vadd.f32 %v1359, 0.0
        %v1376 = vadd.f32 %v1360, 0.0
        %1377 = vset.pattern.permute.xlu0 1
        %1378 = vperm.xlu0 %1377, %v790
        %v1379 = vpop.permute.xlu0 %1378
        %1381 = vset.pattern.permute.xlu0 1
        %1382 = vperm.xlu0 %1381, %v791
        %v1383 = vpop.permute.xlu0 %1382
        %1385 = vset.pattern.permute.xlu0 1
        %1386 = vperm.xlu0 %1385, %v792
        %v1387 = vpop.permute.xlu0 %1386
        %1389 = vset.pattern.permute.xlu0 1
        %1390 = vperm.xlu0 %1389, %v793
        %v1391 = vpop.permute.xlu0 %1390
        %1393 = vset.pattern.permute.xlu0 1
        %1394 = vperm.xlu0 %1393, %v794
        %v1395 = vpop.permute.xlu0 %1394
        %1397 = vset.pattern.permute.xlu0 1
        %1398 = vperm.xlu0 %1397, %v795
        %v1399 = vpop.permute.xlu0 %1398
        %1401 = vset.pattern.permute.xlu0 1
        %1402 = vperm.xlu0 %1401, %v796
        %v1403 = vpop.permute.xlu0 %1402
        %1405 = vset.pattern.permute.xlu0 1
        %1406 = vperm.xlu0 %1405, %v797
        %v1407 = vpop.permute.xlu0 %1406
        %1409 = vset.pattern.permute.xlu0 1
        %1410 = vperm.xlu0 %1409, %v798
        %v1411 = vpop.permute.xlu0 %1410
        %1413 = vset.pattern.permute.xlu0 1
        %1414 = vperm.xlu0 %1413, %v799
        %v1415 = vpop.permute.xlu0 %1414
        %1417 = vset.pattern.permute.xlu0 1
        %1418 = vperm.xlu0 %1417, %v800
        %v1419 = vpop.permute.xlu0 %1418
        %1421 = vset.pattern.permute.xlu0 1
        %1422 = vperm.xlu0 %1421, %v801
        %v1423 = vpop.permute.xlu0 %1422
        %1425 = vset.pattern.permute.xlu0 1
        %1426 = vperm.xlu0 %1425, %v802
        %v1427 = vpop.permute.xlu0 %1426
        %1429 = vset.pattern.permute.xlu0 1
        %1430 = vperm.xlu0 %1429, %v803
        %v1431 = vpop.permute.xlu0 %1430
        %1433 = vset.pattern.permute.xlu0 1
        %1434 = vperm.xlu0 %1433, %v804
        %v1435 = vpop.permute.xlu0 %1434
        %1437 = vset.pattern.permute.xlu0 1
        %1438 = vperm.xlu0 %1437, %v805
        %v1439 = vpop.permute.xlu0 %1438
        %v1441 = vmul.f32 %v758, %v1379
        %v1442 = vmul.f32 %v760, %v1383
        %v1443 = vmul.f32 %v762, %v1387
        %v1444 = vmul.f32 %v764, %v1391
        %v1445 = vmul.f32 %v766, %v1395
        %v1446 = vmul.f32 %v768, %v1399
        %v1447 = vmul.f32 %v770, %v1403
        %v1448 = vmul.f32 %v772, %v1407
        %v1449 = vmul.f32 %v774, %v1411
        %v1450 = vmul.f32 %v776, %v1415
        %v1451 = vmul.f32 %v778, %v1419
        %v1452 = vmul.f32 %v780, %v1423
        %v1453 = vmul.f32 %v782, %v1427
        %v1454 = vmul.f32 %v784, %v1431
        %v1455 = vmul.f32 %v786, %v1435
        %v1456 = vmul.f32 %v788, %v1439
        %1457 = vrot.lane.b32.xlu0 %v758, 112
        %v1458 = vpop.permute.xlu0 %1457
        %1459 = vrot.lane.b32.xlu0 %v760, 112
        %v1460 = vpop.permute.xlu0 %1459
        %1461 = vrot.lane.b32.xlu0 %v762, 112
        %v1462 = vpop.permute.xlu0 %1461
        %1463 = vrot.lane.b32.xlu0 %v764, 112
        %v1464 = vpop.permute.xlu0 %1463
        %1465 = vrot.lane.b32.xlu0 %v766, 112
        %v1466 = vpop.permute.xlu0 %1465
        %1467 = vrot.lane.b32.xlu0 %v768, 112
        %v1468 = vpop.permute.xlu0 %1467
        %1469 = vrot.lane.b32.xlu0 %v770, 112
        %v1470 = vpop.permute.xlu0 %1469
        %1471 = vrot.lane.b32.xlu0 %v772, 112
        %v1472 = vpop.permute.xlu0 %1471
        %1473 = vrot.lane.b32.xlu0 %v774, 112
        %v1474 = vpop.permute.xlu0 %1473
        %1475 = vrot.lane.b32.xlu0 %v776, 112
        %v1476 = vpop.permute.xlu0 %1475
        %1477 = vrot.lane.b32.xlu0 %v778, 112
        %v1478 = vpop.permute.xlu0 %1477
        %1479 = vrot.lane.b32.xlu0 %v780, 112
        %v1480 = vpop.permute.xlu0 %1479
        %1481 = vrot.lane.b32.xlu0 %v782, 112
        %v1482 = vpop.permute.xlu0 %1481
        %1483 = vrot.lane.b32.xlu0 %v784, 112
        %v1484 = vpop.permute.xlu0 %1483
        %1485 = vrot.lane.b32.xlu0 %v786, 112
        %v1486 = vpop.permute.xlu0 %1485
        %1487 = vrot.lane.b32.xlu0 %v788, 112
        %v1488 = vpop.permute.xlu0 %1487
        %1489 = vrot.lane.b32.xlu0 %v759, 112
        %v1490 = vpop.permute.xlu0 %1489
        %1491 = vrot.lane.b32.xlu0 %v761, 112
        %v1492 = vpop.permute.xlu0 %1491
        %1493 = vrot.lane.b32.xlu0 %v763, 112
        %v1494 = vpop.permute.xlu0 %1493
        %1495 = vrot.lane.b32.xlu0 %v765, 112
        %v1496 = vpop.permute.xlu0 %1495
        %1497 = vrot.lane.b32.xlu0 %v767, 112
        %v1498 = vpop.permute.xlu0 %1497
        %1499 = vrot.lane.b32.xlu0 %v769, 112
        %v1500 = vpop.permute.xlu0 %1499
        %1501 = vrot.lane.b32.xlu0 %v771, 112
        %v1502 = vpop.permute.xlu0 %1501
        %1503 = vrot.lane.b32.xlu0 %v773, 112
        %v1504 = vpop.permute.xlu0 %1503
        %1505 = vrot.lane.b32.xlu0 %v775, 112
        %v1506 = vpop.permute.xlu0 %1505
        %1507 = vrot.lane.b32.xlu0 %v777, 112
        %v1508 = vpop.permute.xlu0 %1507
        %1509 = vrot.lane.b32.xlu0 %v779, 112
        %v1510 = vpop.permute.xlu0 %1509
        %1511 = vrot.lane.b32.xlu0 %v781, 112
        %v1512 = vpop.permute.xlu0 %1511
        %1513 = vrot.lane.b32.xlu0 %v783, 112
        %v1514 = vpop.permute.xlu0 %1513
        %1515 = vrot.lane.b32.xlu0 %v785, 112
        %v1516 = vpop.permute.xlu0 %1515
        %1517 = vrot.lane.b32.xlu0 %v787, 112
        %v1518 = vpop.permute.xlu0 %1517
        %1519 = vrot.lane.b32.xlu0 %v789, 112
        %v1520 = vpop.permute.xlu0 %1519
        %vm1521 = vcmp.lt.s32.totalorder %v873, 112
        %v1522 = vsel %vm1521, %v1458, %v1490
        %v1523 = vsel %vm1521, %v1460, %v1492
        %v1524 = vsel %vm1521, %v1462, %v1494
        %v1525 = vsel %vm1521, %v1464, %v1496
        %v1526 = vsel %vm1521, %v1466, %v1498
        %v1527 = vsel %vm1521, %v1468, %v1500
        %v1528 = vsel %vm1521, %v1470, %v1502
        %v1529 = vsel %vm1521, %v1472, %v1504
        %v1530 = vsel %vm1521, %v1474, %v1506
        %v1531 = vsel %vm1521, %v1476, %v1508
        %v1532 = vsel %vm1521, %v1478, %v1510
        %v1533 = vsel %vm1521, %v1480, %v1512
        %v1534 = vsel %vm1521, %v1482, %v1514
        %v1535 = vsel %vm1521, %v1484, %v1516
        %v1536 = vsel %vm1521, %v1486, %v1518
        %v1537 = vsel %vm1521, %v1488, %v1520
        %1538 = vset.pattern.permute.xlu0 4
        %1539 = vperm.xlu0 %1538, %v790
        %v1540 = vpop.permute.xlu0 %1539
        %1542 = vset.pattern.permute.xlu0 4
        %1543 = vperm.xlu0 %1542, %v791
        %v1544 = vpop.permute.xlu0 %1543
        %1546 = vset.pattern.permute.xlu0 4
        %1547 = vperm.xlu0 %1546, %v792
        %v1548 = vpop.permute.xlu0 %1547
        %1550 = vset.pattern.permute.xlu0 4
        %1551 = vperm.xlu0 %1550, %v793
        %v1552 = vpop.permute.xlu0 %1551
        %1554 = vset.pattern.permute.xlu0 4
        %1555 = vperm.xlu0 %1554, %v794
        %v1556 = vpop.permute.xlu0 %1555
        %1558 = vset.pattern.permute.xlu0 4
        %1559 = vperm.xlu0 %1558, %v795
        %v1560 = vpop.permute.xlu0 %1559
        %1562 = vset.pattern.permute.xlu0 4
        %1563 = vperm.xlu0 %1562, %v796
        %v1564 = vpop.permute.xlu0 %1563
        %1566 = vset.pattern.permute.xlu0 4
        %1567 = vperm.xlu0 %1566, %v797
        %v1568 = vpop.permute.xlu0 %1567
        %1570 = vset.pattern.permute.xlu0 4
        %1571 = vperm.xlu0 %1570, %v798
        %v1572 = vpop.permute.xlu0 %1571
        %1574 = vset.pattern.permute.xlu0 4
        %1575 = vperm.xlu0 %1574, %v799
        %v1576 = vpop.permute.xlu0 %1575
        %1578 = vset.pattern.permute.xlu0 4
        %1579 = vperm.xlu0 %1578, %v800
        %v1580 = vpop.permute.xlu0 %1579
        %1582 = vset.pattern.permute.xlu0 4
        %1583 = vperm.xlu0 %1582, %v801
        %v1584 = vpop.permute.xlu0 %1583
        %1586 = vset.pattern.permute.xlu0 4
        %1587 = vperm.xlu0 %1586, %v802
        %v1588 = vpop.permute.xlu0 %1587
        %1590 = vset.pattern.permute.xlu0 4
        %1591 = vperm.xlu0 %1590, %v803
        %v1592 = vpop.permute.xlu0 %1591
        %1594 = vset.pattern.permute.xlu0 4
        %1595 = vperm.xlu0 %1594, %v804
        %v1596 = vpop.permute.xlu0 %1595
        %1598 = vset.pattern.permute.xlu0 4
        %1599 = vperm.xlu0 %1598, %v805
        %v1600 = vpop.permute.xlu0 %1599
        %v1602 = vmul.f32 %v1522, %v1540
        %v1603 = vmul.f32 %v1523, %v1544
        %v1604 = vmul.f32 %v1524, %v1548
        %v1605 = vmul.f32 %v1525, %v1552
        %v1606 = vmul.f32 %v1526, %v1556
        %v1607 = vmul.f32 %v1527, %v1560
        %v1608 = vmul.f32 %v1528, %v1564
        %v1609 = vmul.f32 %v1529, %v1568
        %v1610 = vmul.f32 %v1530, %v1572
        %v1611 = vmul.f32 %v1531, %v1576
        %v1612 = vmul.f32 %v1532, %v1580
        %v1613 = vmul.f32 %v1533, %v1584
        %v1614 = vmul.f32 %v1534, %v1588
        %v1615 = vmul.f32 %v1535, %v1592
        %v1616 = vmul.f32 %v1536, %v1596
        %v1617 = vmul.f32 %v1537, %v1600
        %v1618 = vadd.f32 %v1441, %v1602
        %v1619 = vadd.f32 %v1442, %v1603
        %v1620 = vadd.f32 %v1443, %v1604
        %v1621 = vadd.f32 %v1444, %v1605
        %v1622 = vadd.f32 %v1445, %v1606
        %v1623 = vadd.f32 %v1446, %v1607
        %v1624 = vadd.f32 %v1447, %v1608
        %v1625 = vadd.f32 %v1448, %v1609
        %v1626 = vadd.f32 %v1449, %v1610
        %v1627 = vadd.f32 %v1450, %v1611
        %v1628 = vadd.f32 %v1451, %v1612
        %v1629 = vadd.f32 %v1452, %v1613
        %v1630 = vadd.f32 %v1453, %v1614
        %v1631 = vadd.f32 %v1454, %v1615
        %v1632 = vadd.f32 %v1455, %v1616
        %v1633 = vadd.f32 %v1456, %v1617
        %1634 = vrot.lane.b32.xlu0 %v758, 96
        %v1635 = vpop.permute.xlu0 %1634
        %1636 = vrot.lane.b32.xlu0 %v760, 96
        %v1637 = vpop.permute.xlu0 %1636
        %1638 = vrot.lane.b32.xlu0 %v762, 96
        %v1639 = vpop.permute.xlu0 %1638
        %1640 = vrot.lane.b32.xlu0 %v764, 96
        %v1641 = vpop.permute.xlu0 %1640
        %1642 = vrot.lane.b32.xlu0 %v766, 96
        %v1643 = vpop.permute.xlu0 %1642
        %1644 = vrot.lane.b32.xlu0 %v768, 96
        %v1645 = vpop.permute.xlu0 %1644
        %1646 = vrot.lane.b32.xlu0 %v770, 96
        %v1647 = vpop.permute.xlu0 %1646
        %1648 = vrot.lane.b32.xlu0 %v772, 96
        %v1649 = vpop.permute.xlu0 %1648
        %1650 = vrot.lane.b32.xlu0 %v774, 96
        %v1651 = vpop.permute.xlu0 %1650
        %1652 = vrot.lane.b32.xlu0 %v776, 96
        %v1653 = vpop.permute.xlu0 %1652
        %1654 = vrot.lane.b32.xlu0 %v778, 96
        %v1655 = vpop.permute.xlu0 %1654
        %1656 = vrot.lane.b32.xlu0 %v780, 96
        %v1657 = vpop.permute.xlu0 %1656
        %1658 = vrot.lane.b32.xlu0 %v782, 96
        %v1659 = vpop.permute.xlu0 %1658
        %1660 = vrot.lane.b32.xlu0 %v784, 96
        %v1661 = vpop.permute.xlu0 %1660
        %1662 = vrot.lane.b32.xlu0 %v786, 96
        %v1663 = vpop.permute.xlu0 %1662
        %1664 = vrot.lane.b32.xlu0 %v788, 96
        %v1665 = vpop.permute.xlu0 %1664
        %1666 = vrot.lane.b32.xlu0 %v759, 96
        %v1667 = vpop.permute.xlu0 %1666
        %1668 = vrot.lane.b32.xlu0 %v761, 96
        %v1669 = vpop.permute.xlu0 %1668
        %1670 = vrot.lane.b32.xlu0 %v763, 96
        %v1671 = vpop.permute.xlu0 %1670
        %1672 = vrot.lane.b32.xlu0 %v765, 96
        %v1673 = vpop.permute.xlu0 %1672
        %1674 = vrot.lane.b32.xlu0 %v767, 96
        %v1675 = vpop.permute.xlu0 %1674
        %1676 = vrot.lane.b32.xlu0 %v769, 96
        %v1677 = vpop.permute.xlu0 %1676
        %1678 = vrot.lane.b32.xlu0 %v771, 96
        %v1679 = vpop.permute.xlu0 %1678
        %1680 = vrot.lane.b32.xlu0 %v773, 96
        %v1681 = vpop.permute.xlu0 %1680
        %1682 = vrot.lane.b32.xlu0 %v775, 96
        %v1683 = vpop.permute.xlu0 %1682
        %1684 = vrot.lane.b32.xlu0 %v777, 96
        %v1685 = vpop.permute.xlu0 %1684
        %1686 = vrot.lane.b32.xlu0 %v779, 96
        %v1687 = vpop.permute.xlu0 %1686
        %1688 = vrot.lane.b32.xlu0 %v781, 96
        %v1689 = vpop.permute.xlu0 %1688
        %1690 = vrot.lane.b32.xlu0 %v783, 96
        %v1691 = vpop.permute.xlu0 %1690
        %1692 = vrot.lane.b32.xlu0 %v785, 96
        %v1693 = vpop.permute.xlu0 %1692
        %1694 = vrot.lane.b32.xlu0 %v787, 96
        %v1695 = vpop.permute.xlu0 %1694
        %1696 = vrot.lane.b32.xlu0 %v789, 96
        %v1697 = vpop.permute.xlu0 %1696
        %vm1698 = vcmp.lt.s32.totalorder %v873, 96
        %v1699 = vsel %vm1698, %v1635, %v1667
        %v1700 = vsel %vm1698, %v1637, %v1669
        %v1701 = vsel %vm1698, %v1639, %v1671
        %v1702 = vsel %vm1698, %v1641, %v1673
        %v1703 = vsel %vm1698, %v1643, %v1675
        %v1704 = vsel %vm1698, %v1645, %v1677
        %v1705 = vsel %vm1698, %v1647, %v1679
        %v1706 = vsel %vm1698, %v1649, %v1681
        %v1707 = vsel %vm1698, %v1651, %v1683
        %v1708 = vsel %vm1698, %v1653, %v1685
        %v1709 = vsel %vm1698, %v1655, %v1687
        %v1710 = vsel %vm1698, %v1657, %v1689
        %v1711 = vsel %vm1698, %v1659, %v1691
        %v1712 = vsel %vm1698, %v1661, %v1693
        %v1713 = vsel %vm1698, %v1663, %v1695
        %v1714 = vsel %vm1698, %v1665, %v1697
        %1715 = vset.pattern.permute.xlu0 7
        %1716 = vperm.xlu0 %1715, %v790
        %v1717 = vpop.permute.xlu0 %1716
        %1719 = vset.pattern.permute.xlu0 7
        %1720 = vperm.xlu0 %1719, %v791
        %v1721 = vpop.permute.xlu0 %1720
        %1723 = vset.pattern.permute.xlu0 7
        %1724 = vperm.xlu0 %1723, %v792
        %v1725 = vpop.permute.xlu0 %1724
        %1727 = vset.pattern.permute.xlu0 7
        %1728 = vperm.xlu0 %1727, %v793
        %v1729 = vpop.permute.xlu0 %1728
        %1731 = vset.pattern.permute.xlu0 7
        %1732 = vperm.xlu0 %1731, %v794
        %v1733 = vpop.permute.xlu0 %1732
        %1735 = vset.pattern.permute.xlu0 7
        %1736 = vperm.xlu0 %1735, %v795
        %v1737 = vpop.permute.xlu0 %1736
        %1739 = vset.pattern.permute.xlu0 7
        %1740 = vperm.xlu0 %1739, %v796
        %v1741 = vpop.permute.xlu0 %1740
        %1743 = vset.pattern.permute.xlu0 7
        %1744 = vperm.xlu0 %1743, %v797
        %v1745 = vpop.permute.xlu0 %1744
        %1747 = vset.pattern.permute.xlu0 7
        %1748 = vperm.xlu0 %1747, %v798
        %v1749 = vpop.permute.xlu0 %1748
        %1751 = vset.pattern.permute.xlu0 7
        %1752 = vperm.xlu0 %1751, %v799
        %v1753 = vpop.permute.xlu0 %1752
        %1755 = vset.pattern.permute.xlu0 7
        %1756 = vperm.xlu0 %1755, %v800
        %v1757 = vpop.permute.xlu0 %1756
        %1759 = vset.pattern.permute.xlu0 7
        %1760 = vperm.xlu0 %1759, %v801
        %v1761 = vpop.permute.xlu0 %1760
        %1763 = vset.pattern.permute.xlu0 7
        %1764 = vperm.xlu0 %1763, %v802
        %v1765 = vpop.permute.xlu0 %1764
        %1767 = vset.pattern.permute.xlu0 7
        %1768 = vperm.xlu0 %1767, %v803
        %v1769 = vpop.permute.xlu0 %1768
        %1771 = vset.pattern.permute.xlu0 7
        %1772 = vperm.xlu0 %1771, %v804
        %v1773 = vpop.permute.xlu0 %1772
        %1775 = vset.pattern.permute.xlu0 7
        %1776 = vperm.xlu0 %1775, %v805
        %v1777 = vpop.permute.xlu0 %1776
        %v1779 = vmul.f32 %v1699, %v1717
        %v1780 = vmul.f32 %v1700, %v1721
        %v1781 = vmul.f32 %v1701, %v1725
        %v1782 = vmul.f32 %v1702, %v1729
        %v1783 = vmul.f32 %v1703, %v1733
        %v1784 = vmul.f32 %v1704, %v1737
        %v1785 = vmul.f32 %v1705, %v1741
        %v1786 = vmul.f32 %v1706, %v1745
        %v1787 = vmul.f32 %v1707, %v1749
        %v1788 = vmul.f32 %v1708, %v1753
        %v1789 = vmul.f32 %v1709, %v1757
        %v1790 = vmul.f32 %v1710, %v1761
        %v1791 = vmul.f32 %v1711, %v1765
        %v1792 = vmul.f32 %v1712, %v1769
        %v1793 = vmul.f32 %v1713, %v1773
        %v1794 = vmul.f32 %v1714, %v1777
        %v1795 = vadd.f32 %v1618, %v1779
        %v1796 = vadd.f32 %v1619, %v1780
        %v1797 = vadd.f32 %v1620, %v1781
        %v1798 = vadd.f32 %v1621, %v1782
        %v1799 = vadd.f32 %v1622, %v1783
        %v1800 = vadd.f32 %v1623, %v1784
        %v1801 = vadd.f32 %v1624, %v1785
        %v1802 = vadd.f32 %v1625, %v1786
        %v1803 = vadd.f32 %v1626, %v1787
        %v1804 = vadd.f32 %v1627, %v1788
        %v1805 = vadd.f32 %v1628, %v1789
        %v1806 = vadd.f32 %v1629, %v1790
        %v1807 = vadd.f32 %v1630, %v1791
        %v1808 = vadd.f32 %v1631, %v1792
        %v1809 = vadd.f32 %v1632, %v1793
        %v1810 = vadd.f32 %v1633, %v1794
        %v1811 = vadd.f32 %v1361, %v1795
        %v1812 = vadd.f32 %v1362, %v1796
        %v1813 = vadd.f32 %v1363, %v1797
        %v1814 = vadd.f32 %v1364, %v1798
        %v1815 = vadd.f32 %v1365, %v1799
        %v1816 = vadd.f32 %v1366, %v1800
        %v1817 = vadd.f32 %v1367, %v1801
        %v1818 = vadd.f32 %v1368, %v1802
        %v1819 = vadd.f32 %v1369, %v1803
        %v1820 = vadd.f32 %v1370, %v1804
        %v1821 = vadd.f32 %v1371, %v1805
        %v1822 = vadd.f32 %v1372, %v1806
        %v1823 = vadd.f32 %v1373, %v1807
        %v1824 = vadd.f32 %v1374, %v1808
        %v1825 = vadd.f32 %v1375, %v1809
        %v1826 = vadd.f32 %v1376, %v1810
        %1827 = vrot.lane.b32.xlu0 %v758, 127
        %v1828 = vpop.permute.xlu0 %1827
        %1829 = vrot.lane.b32.xlu0 %v760, 127
        %v1830 = vpop.permute.xlu0 %1829
        %1831 = vrot.lane.b32.xlu0 %v762, 127
        %v1832 = vpop.permute.xlu0 %1831
        %1833 = vrot.lane.b32.xlu0 %v764, 127
        %v1834 = vpop.permute.xlu0 %1833
        %1835 = vrot.lane.b32.xlu0 %v766, 127
        %v1836 = vpop.permute.xlu0 %1835
        %1837 = vrot.lane.b32.xlu0 %v768, 127
        %v1838 = vpop.permute.xlu0 %1837
        %1839 = vrot.lane.b32.xlu0 %v770, 127
        %v1840 = vpop.permute.xlu0 %1839
        %1841 = vrot.lane.b32.xlu0 %v772, 127
        %v1842 = vpop.permute.xlu0 %1841
        %1843 = vrot.lane.b32.xlu0 %v774, 127
        %v1844 = vpop.permute.xlu0 %1843
        %1845 = vrot.lane.b32.xlu0 %v776, 127
        %v1846 = vpop.permute.xlu0 %1845
        %1847 = vrot.lane.b32.xlu0 %v778, 127
        %v1848 = vpop.permute.xlu0 %1847
        %1849 = vrot.lane.b32.xlu0 %v780, 127
        %v1850 = vpop.permute.xlu0 %1849
        %1851 = vrot.lane.b32.xlu0 %v782, 127
        %v1852 = vpop.permute.xlu0 %1851
        %1853 = vrot.lane.b32.xlu0 %v784, 127
        %v1854 = vpop.permute.xlu0 %1853
        %1855 = vrot.lane.b32.xlu0 %v786, 127
        %v1856 = vpop.permute.xlu0 %1855
        %1857 = vrot.lane.b32.xlu0 %v788, 127
        %v1858 = vpop.permute.xlu0 %1857
        %1859 = vrot.lane.b32.xlu0 %v759, 127
        %v1860 = vpop.permute.xlu0 %1859
        %1861 = vrot.lane.b32.xlu0 %v761, 127
        %v1862 = vpop.permute.xlu0 %1861
        %1863 = vrot.lane.b32.xlu0 %v763, 127
        %v1864 = vpop.permute.xlu0 %1863
        %1865 = vrot.lane.b32.xlu0 %v765, 127
        %v1866 = vpop.permute.xlu0 %1865
        %1867 = vrot.lane.b32.xlu0 %v767, 127
        %v1868 = vpop.permute.xlu0 %1867
        %1869 = vrot.lane.b32.xlu0 %v769, 127
        %v1870 = vpop.permute.xlu0 %1869
        %1871 = vrot.lane.b32.xlu0 %v771, 127
        %v1872 = vpop.permute.xlu0 %1871
        %1873 = vrot.lane.b32.xlu0 %v773, 127
        %v1874 = vpop.permute.xlu0 %1873
        %1875 = vrot.lane.b32.xlu0 %v775, 127
        %v1876 = vpop.permute.xlu0 %1875
        %1877 = vrot.lane.b32.xlu0 %v777, 127
        %v1878 = vpop.permute.xlu0 %1877
        %1879 = vrot.lane.b32.xlu0 %v779, 127
        %v1880 = vpop.permute.xlu0 %1879
        %1881 = vrot.lane.b32.xlu0 %v781, 127
        %v1882 = vpop.permute.xlu0 %1881
        %1883 = vrot.lane.b32.xlu0 %v783, 127
        %v1884 = vpop.permute.xlu0 %1883
        %1885 = vrot.lane.b32.xlu0 %v785, 127
        %v1886 = vpop.permute.xlu0 %1885
        %1887 = vrot.lane.b32.xlu0 %v787, 127
        %v1888 = vpop.permute.xlu0 %1887
        %1889 = vrot.lane.b32.xlu0 %v789, 127
        %v1890 = vpop.permute.xlu0 %1889
        %vm1891 = vcmp.lt.s32.totalorder %v873, 127
        %v1892 = vsel %vm1891, %v1828, %v1860
        %v1893 = vsel %vm1891, %v1830, %v1862
        %v1894 = vsel %vm1891, %v1832, %v1864
        %v1895 = vsel %vm1891, %v1834, %v1866
        %v1896 = vsel %vm1891, %v1836, %v1868
        %v1897 = vsel %vm1891, %v1838, %v1870
        %v1898 = vsel %vm1891, %v1840, %v1872
        %v1899 = vsel %vm1891, %v1842, %v1874
        %v1900 = vsel %vm1891, %v1844, %v1876
        %v1901 = vsel %vm1891, %v1846, %v1878
        %v1902 = vsel %vm1891, %v1848, %v1880
        %v1903 = vsel %vm1891, %v1850, %v1882
        %v1904 = vsel %vm1891, %v1852, %v1884
        %v1905 = vsel %vm1891, %v1854, %v1886
        %v1906 = vsel %vm1891, %v1856, %v1888
        %v1907 = vsel %vm1891, %v1858, %v1890
        %1908 = vset.pattern.permute.xlu0 2
        %1909 = vperm.xlu0 %1908, %v790
        %v1910 = vpop.permute.xlu0 %1909
        %1912 = vset.pattern.permute.xlu0 2
        %1913 = vperm.xlu0 %1912, %v791
        %v1914 = vpop.permute.xlu0 %1913
        %1916 = vset.pattern.permute.xlu0 2
        %1917 = vperm.xlu0 %1916, %v792
        %v1918 = vpop.permute.xlu0 %1917
        %1920 = vset.pattern.permute.xlu0 2
        %1921 = vperm.xlu0 %1920, %v793
        %v1922 = vpop.permute.xlu0 %1921
        %1924 = vset.pattern.permute.xlu0 2
        %1925 = vperm.xlu0 %1924, %v794
        %v1926 = vpop.permute.xlu0 %1925
        %1928 = vset.pattern.permute.xlu0 2
        %1929 = vperm.xlu0 %1928, %v795
        %v1930 = vpop.permute.xlu0 %1929
        %1932 = vset.pattern.permute.xlu0 2
        %1933 = vperm.xlu0 %1932, %v796
        %v1934 = vpop.permute.xlu0 %1933
        %1936 = vset.pattern.permute.xlu0 2
        %1937 = vperm.xlu0 %1936, %v797
        %v1938 = vpop.permute.xlu0 %1937
        %1940 = vset.pattern.permute.xlu0 2
        %1941 = vperm.xlu0 %1940, %v798
        %v1942 = vpop.permute.xlu0 %1941
        %1944 = vset.pattern.permute.xlu0 2
        %1945 = vperm.xlu0 %1944, %v799
        %v1946 = vpop.permute.xlu0 %1945
        %1948 = vset.pattern.permute.xlu0 2
        %1949 = vperm.xlu0 %1948, %v800
        %v1950 = vpop.permute.xlu0 %1949
        %1952 = vset.pattern.permute.xlu0 2
        %1953 = vperm.xlu0 %1952, %v801
        %v1954 = vpop.permute.xlu0 %1953
        %1956 = vset.pattern.permute.xlu0 2
        %1957 = vperm.xlu0 %1956, %v802
        %v1958 = vpop.permute.xlu0 %1957
        %1960 = vset.pattern.permute.xlu0 2
        %1961 = vperm.xlu0 %1960, %v803
        %v1962 = vpop.permute.xlu0 %1961
        %1964 = vset.pattern.permute.xlu0 2
        %1965 = vperm.xlu0 %1964, %v804
        %v1966 = vpop.permute.xlu0 %1965
        %1968 = vset.pattern.permute.xlu0 2
        %1969 = vperm.xlu0 %1968, %v805
        %v1970 = vpop.permute.xlu0 %1969
        %v1972 = vmul.f32 %v1892, %v1910
        %v1973 = vmul.f32 %v1893, %v1914
        %v1974 = vmul.f32 %v1894, %v1918
        %v1975 = vmul.f32 %v1895, %v1922
        %v1976 = vmul.f32 %v1896, %v1926
        %v1977 = vmul.f32 %v1897, %v1930
        %v1978 = vmul.f32 %v1898, %v1934
        %v1979 = vmul.f32 %v1899, %v1938
        %v1980 = vmul.f32 %v1900, %v1942
        %v1981 = vmul.f32 %v1901, %v1946
        %v1982 = vmul.f32 %v1902, %v1950
        %v1983 = vmul.f32 %v1903, %v1954
        %v1984 = vmul.f32 %v1904, %v1958
        %v1985 = vmul.f32 %v1905, %v1962
        %v1986 = vmul.f32 %v1906, %v1966
        %v1987 = vmul.f32 %v1907, %v1970
        %1988 = vrot.lane.b32.xlu0 %v758, 111
        %v1989 = vpop.permute.xlu0 %1988
        %1990 = vrot.lane.b32.xlu0 %v760, 111
        %v1991 = vpop.permute.xlu0 %1990
        %1992 = vrot.lane.b32.xlu0 %v762, 111
        %v1993 = vpop.permute.xlu0 %1992
        %1994 = vrot.lane.b32.xlu0 %v764, 111
        %v1995 = vpop.permute.xlu0 %1994
        %1996 = vrot.lane.b32.xlu0 %v766, 111
        %v1997 = vpop.permute.xlu0 %1996
        %1998 = vrot.lane.b32.xlu0 %v768, 111
        %v1999 = vpop.permute.xlu0 %1998
        %2000 = vrot.lane.b32.xlu0 %v770, 111
        %v2001 = vpop.permute.xlu0 %2000
        %2002 = vrot.lane.b32.xlu0 %v772, 111
        %v2003 = vpop.permute.xlu0 %2002
        %2004 = vrot.lane.b32.xlu0 %v774, 111
        %v2005 = vpop.permute.xlu0 %2004
        %2006 = vrot.lane.b32.xlu0 %v776, 111
        %v2007 = vpop.permute.xlu0 %2006
        %2008 = vrot.lane.b32.xlu0 %v778, 111
        %v2009 = vpop.permute.xlu0 %2008
        %2010 = vrot.lane.b32.xlu0 %v780, 111
        %v2011 = vpop.permute.xlu0 %2010
        %2012 = vrot.lane.b32.xlu0 %v782, 111
        %v2013 = vpop.permute.xlu0 %2012
        %2014 = vrot.lane.b32.xlu0 %v784, 111
        %v2015 = vpop.permute.xlu0 %2014
        %2016 = vrot.lane.b32.xlu0 %v786, 111
        %v2017 = vpop.permute.xlu0 %2016
        %2018 = vrot.lane.b32.xlu0 %v788, 111
        %v2019 = vpop.permute.xlu0 %2018
        %2020 = vrot.lane.b32.xlu0 %v759, 111
        %v2021 = vpop.permute.xlu0 %2020
        %2022 = vrot.lane.b32.xlu0 %v761, 111
        %v2023 = vpop.permute.xlu0 %2022
        %2024 = vrot.lane.b32.xlu0 %v763, 111
        %v2025 = vpop.permute.xlu0 %2024
        %2026 = vrot.lane.b32.xlu0 %v765, 111
        %v2027 = vpop.permute.xlu0 %2026
        %2028 = vrot.lane.b32.xlu0 %v767, 111
        %v2029 = vpop.permute.xlu0 %2028
        %2030 = vrot.lane.b32.xlu0 %v769, 111
        %v2031 = vpop.permute.xlu0 %2030
        %2032 = vrot.lane.b32.xlu0 %v771, 111
        %v2033 = vpop.permute.xlu0 %2032
        %2034 = vrot.lane.b32.xlu0 %v773, 111
        %v2035 = vpop.permute.xlu0 %2034
        %2036 = vrot.lane.b32.xlu0 %v775, 111
        %v2037 = vpop.permute.xlu0 %2036
        %2038 = vrot.lane.b32.xlu0 %v777, 111
        %v2039 = vpop.permute.xlu0 %2038
        %2040 = vrot.lane.b32.xlu0 %v779, 111
        %v2041 = vpop.permute.xlu0 %2040
        %2042 = vrot.lane.b32.xlu0 %v781, 111
        %v2043 = vpop.permute.xlu0 %2042
        %2044 = vrot.lane.b32.xlu0 %v783, 111
        %v2045 = vpop.permute.xlu0 %2044
        %2046 = vrot.lane.b32.xlu0 %v785, 111
        %v2047 = vpop.permute.xlu0 %2046
        %2048 = vrot.lane.b32.xlu0 %v787, 111
        %v2049 = vpop.permute.xlu0 %2048
        %2050 = vrot.lane.b32.xlu0 %v789, 111
        %v2051 = vpop.permute.xlu0 %2050
        %vm2052 = vcmp.lt.s32.totalorder %v873, 111
        %v2053 = vsel %vm2052, %v1989, %v2021
        %v2054 = vsel %vm2052, %v1991, %v2023
        %v2055 = vsel %vm2052, %v1993, %v2025
        %v2056 = vsel %vm2052, %v1995, %v2027
        %v2057 = vsel %vm2052, %v1997, %v2029
        %v2058 = vsel %vm2052, %v1999, %v2031
        %v2059 = vsel %vm2052, %v2001, %v2033
        %v2060 = vsel %vm2052, %v2003, %v2035
        %v2061 = vsel %vm2052, %v2005, %v2037
        %v2062 = vsel %vm2052, %v2007, %v2039
        %v2063 = vsel %vm2052, %v2009, %v2041
        %v2064 = vsel %vm2052, %v2011, %v2043
        %v2065 = vsel %vm2052, %v2013, %v2045
        %v2066 = vsel %vm2052, %v2015, %v2047
        %v2067 = vsel %vm2052, %v2017, %v2049
        %v2068 = vsel %vm2052, %v2019, %v2051
        %2069 = vset.pattern.permute.xlu0 5
        %2070 = vperm.xlu0 %2069, %v790
        %v2071 = vpop.permute.xlu0 %2070
        %2073 = vset.pattern.permute.xlu0 5
        %2074 = vperm.xlu0 %2073, %v791
        %v2075 = vpop.permute.xlu0 %2074
        %2077 = vset.pattern.permute.xlu0 5
        %2078 = vperm.xlu0 %2077, %v792
        %v2079 = vpop.permute.xlu0 %2078
        %2081 = vset.pattern.permute.xlu0 5
        %2082 = vperm.xlu0 %2081, %v793
        %v2083 = vpop.permute.xlu0 %2082
        %2085 = vset.pattern.permute.xlu0 5
        %2086 = vperm.xlu0 %2085, %v794
        %v2087 = vpop.permute.xlu0 %2086
        %2089 = vset.pattern.permute.xlu0 5
        %2090 = vperm.xlu0 %2089, %v795
        %v2091 = vpop.permute.xlu0 %2090
        %2093 = vset.pattern.permute.xlu0 5
        %2094 = vperm.xlu0 %2093, %v796
        %v2095 = vpop.permute.xlu0 %2094
        %2097 = vset.pattern.permute.xlu0 5
        %2098 = vperm.xlu0 %2097, %v797
        %v2099 = vpop.permute.xlu0 %2098
        %2101 = vset.pattern.permute.xlu0 5
        %2102 = vperm.xlu0 %2101, %v798
        %v2103 = vpop.permute.xlu0 %2102
        %2105 = vset.pattern.permute.xlu0 5
        %2106 = vperm.xlu0 %2105, %v799
        %v2107 = vpop.permute.xlu0 %2106
        %2109 = vset.pattern.permute.xlu0 5
        %2110 = vperm.xlu0 %2109, %v800
        %v2111 = vpop.permute.xlu0 %2110
        %2113 = vset.pattern.permute.xlu0 5
        %2114 = vperm.xlu0 %2113, %v801
        %v2115 = vpop.permute.xlu0 %2114
        %2117 = vset.pattern.permute.xlu0 5
        %2118 = vperm.xlu0 %2117, %v802
        %v2119 = vpop.permute.xlu0 %2118
        %2121 = vset.pattern.permute.xlu0 5
        %2122 = vperm.xlu0 %2121, %v803
        %v2123 = vpop.permute.xlu0 %2122
        %2125 = vset.pattern.permute.xlu0 5
        %2126 = vperm.xlu0 %2125, %v804
        %v2127 = vpop.permute.xlu0 %2126
        %2129 = vset.pattern.permute.xlu0 5
        %2130 = vperm.xlu0 %2129, %v805
        %v2131 = vpop.permute.xlu0 %2130
        %v2133 = vmul.f32 %v2053, %v2071
        %v2134 = vmul.f32 %v2054, %v2075
        %v2135 = vmul.f32 %v2055, %v2079
        %v2136 = vmul.f32 %v2056, %v2083
        %v2137 = vmul.f32 %v2057, %v2087
        %v2138 = vmul.f32 %v2058, %v2091
        %v2139 = vmul.f32 %v2059, %v2095
        %v2140 = vmul.f32 %v2060, %v2099
        %v2141 = vmul.f32 %v2061, %v2103
        %v2142 = vmul.f32 %v2062, %v2107
        %v2143 = vmul.f32 %v2063, %v2111
        %v2144 = vmul.f32 %v2064, %v2115
        %v2145 = vmul.f32 %v2065, %v2119
        %v2146 = vmul.f32 %v2066, %v2123
        %v2147 = vmul.f32 %v2067, %v2127
        %v2148 = vmul.f32 %v2068, %v2131
        %v2149 = vadd.f32 %v1972, %v2133
        %v2150 = vadd.f32 %v1973, %v2134
        %v2151 = vadd.f32 %v1974, %v2135
        %v2152 = vadd.f32 %v1975, %v2136
        %v2153 = vadd.f32 %v1976, %v2137
        %v2154 = vadd.f32 %v1977, %v2138
        %v2155 = vadd.f32 %v1978, %v2139
        %v2156 = vadd.f32 %v1979, %v2140
        %v2157 = vadd.f32 %v1980, %v2141
        %v2158 = vadd.f32 %v1981, %v2142
        %v2159 = vadd.f32 %v1982, %v2143
        %v2160 = vadd.f32 %v1983, %v2144
        %v2161 = vadd.f32 %v1984, %v2145
        %v2162 = vadd.f32 %v1985, %v2146
        %v2163 = vadd.f32 %v1986, %v2147
        %v2164 = vadd.f32 %v1987, %v2148
        %2165 = vrot.lane.b32.xlu0 %v758, 95
        %v2166 = vpop.permute.xlu0 %2165
        %2167 = vrot.lane.b32.xlu0 %v760, 95
        %v2168 = vpop.permute.xlu0 %2167
        %2169 = vrot.lane.b32.xlu0 %v762, 95
        %v2170 = vpop.permute.xlu0 %2169
        %2171 = vrot.lane.b32.xlu0 %v764, 95
        %v2172 = vpop.permute.xlu0 %2171
        %2173 = vrot.lane.b32.xlu0 %v766, 95
        %v2174 = vpop.permute.xlu0 %2173
        %2175 = vrot.lane.b32.xlu0 %v768, 95
        %v2176 = vpop.permute.xlu0 %2175
        %2177 = vrot.lane.b32.xlu0 %v770, 95
        %v2178 = vpop.permute.xlu0 %2177
        %2179 = vrot.lane.b32.xlu0 %v772, 95
        %v2180 = vpop.permute.xlu0 %2179
        %2181 = vrot.lane.b32.xlu0 %v774, 95
        %v2182 = vpop.permute.xlu0 %2181
        %2183 = vrot.lane.b32.xlu0 %v776, 95
        %v2184 = vpop.permute.xlu0 %2183
        %2185 = vrot.lane.b32.xlu0 %v778, 95
        %v2186 = vpop.permute.xlu0 %2185
        %2187 = vrot.lane.b32.xlu0 %v780, 95
        %v2188 = vpop.permute.xlu0 %2187
        %2189 = vrot.lane.b32.xlu0 %v782, 95
        %v2190 = vpop.permute.xlu0 %2189
        %2191 = vrot.lane.b32.xlu0 %v784, 95
        %v2192 = vpop.permute.xlu0 %2191
        %2193 = vrot.lane.b32.xlu0 %v786, 95
        %v2194 = vpop.permute.xlu0 %2193
        %2195 = vrot.lane.b32.xlu0 %v788, 95
        %v2196 = vpop.permute.xlu0 %2195
        %2197 = vrot.lane.b32.xlu0 %v759, 95
        %v2198 = vpop.permute.xlu0 %2197
        %2199 = vrot.lane.b32.xlu0 %v761, 95
        %v2200 = vpop.permute.xlu0 %2199
        %2201 = vrot.lane.b32.xlu0 %v763, 95
        %v2202 = vpop.permute.xlu0 %2201
        %2203 = vrot.lane.b32.xlu0 %v765, 95
        %v2204 = vpop.permute.xlu0 %2203
        %2205 = vrot.lane.b32.xlu0 %v767, 95
        %v2206 = vpop.permute.xlu0 %2205
        %2207 = vrot.lane.b32.xlu0 %v769, 95
        %v2208 = vpop.permute.xlu0 %2207
        %2209 = vrot.lane.b32.xlu0 %v771, 95
        %v2210 = vpop.permute.xlu0 %2209
        %2211 = vrot.lane.b32.xlu0 %v773, 95
        %v2212 = vpop.permute.xlu0 %2211
        %2213 = vrot.lane.b32.xlu0 %v775, 95
        %v2214 = vpop.permute.xlu0 %2213
        %2215 = vrot.lane.b32.xlu0 %v777, 95
        %v2216 = vpop.permute.xlu0 %2215
        %2217 = vrot.lane.b32.xlu0 %v779, 95
        %v2218 = vpop.permute.xlu0 %2217
        %2219 = vrot.lane.b32.xlu0 %v781, 95
        %v2220 = vpop.permute.xlu0 %2219
        %2221 = vrot.lane.b32.xlu0 %v783, 95
        %v2222 = vpop.permute.xlu0 %2221
        %2223 = vrot.lane.b32.xlu0 %v785, 95
        %v2224 = vpop.permute.xlu0 %2223
        %2225 = vrot.lane.b32.xlu0 %v787, 95
        %v2226 = vpop.permute.xlu0 %2225
        %2227 = vrot.lane.b32.xlu0 %v789, 95
        %v2228 = vpop.permute.xlu0 %2227
        %vm2229 = vcmp.lt.s32.totalorder %v873, 95
        %v2230 = vsel %vm2229, %v2166, %v2198
        %v2231 = vsel %vm2229, %v2168, %v2200
        %v2232 = vsel %vm2229, %v2170, %v2202
        %v2233 = vsel %vm2229, %v2172, %v2204
        %v2234 = vsel %vm2229, %v2174, %v2206
        %v2235 = vsel %vm2229, %v2176, %v2208
        %v2236 = vsel %vm2229, %v2178, %v2210
        %v2237 = vsel %vm2229, %v2180, %v2212
        %v2238 = vsel %vm2229, %v2182, %v2214
        %v2239 = vsel %vm2229, %v2184, %v2216
        %v2240 = vsel %vm2229, %v2186, %v2218
        %v2241 = vsel %vm2229, %v2188, %v2220
        %v2242 = vsel %vm2229, %v2190, %v2222
        %v2243 = vsel %vm2229, %v2192, %v2224
        %v2244 = vsel %vm2229, %v2194, %v2226
        %v2245 = vsel %vm2229, %v2196, %v2228
        %2246 = vset.pattern.permute.xlu0 8
        %2247 = vperm.xlu0 %2246, %v790
        %v2248 = vpop.permute.xlu0 %2247
        %2250 = vset.pattern.permute.xlu0 8
        %2251 = vperm.xlu0 %2250, %v791
        %v2252 = vpop.permute.xlu0 %2251
        %2254 = vset.pattern.permute.xlu0 8
        %2255 = vperm.xlu0 %2254, %v792
        %v2256 = vpop.permute.xlu0 %2255
        %2258 = vset.pattern.permute.xlu0 8
        %2259 = vperm.xlu0 %2258, %v793
        %v2260 = vpop.permute.xlu0 %2259
        %2262 = vset.pattern.permute.xlu0 8
        %2263 = vperm.xlu0 %2262, %v794
        %v2264 = vpop.permute.xlu0 %2263
        %2266 = vset.pattern.permute.xlu0 8
        %2267 = vperm.xlu0 %2266, %v795
        %v2268 = vpop.permute.xlu0 %2267
        %2270 = vset.pattern.permute.xlu0 8
        %2271 = vperm.xlu0 %2270, %v796
        %v2272 = vpop.permute.xlu0 %2271
        %2274 = vset.pattern.permute.xlu0 8
        %2275 = vperm.xlu0 %2274, %v797
        %v2276 = vpop.permute.xlu0 %2275
        %2278 = vset.pattern.permute.xlu0 8
        %2279 = vperm.xlu0 %2278, %v798
        %v2280 = vpop.permute.xlu0 %2279
        %2282 = vset.pattern.permute.xlu0 8
        %2283 = vperm.xlu0 %2282, %v799
        %v2284 = vpop.permute.xlu0 %2283
        %2286 = vset.pattern.permute.xlu0 8
        %2287 = vperm.xlu0 %2286, %v800
        %v2288 = vpop.permute.xlu0 %2287
        %2290 = vset.pattern.permute.xlu0 8
        %2291 = vperm.xlu0 %2290, %v801
        %v2292 = vpop.permute.xlu0 %2291
        %2294 = vset.pattern.permute.xlu0 8
        %2295 = vperm.xlu0 %2294, %v802
        %v2296 = vpop.permute.xlu0 %2295
        %2298 = vset.pattern.permute.xlu0 8
        %2299 = vperm.xlu0 %2298, %v803
        %v2300 = vpop.permute.xlu0 %2299
        %2302 = vset.pattern.permute.xlu0 8
        %2303 = vperm.xlu0 %2302, %v804
        %v2304 = vpop.permute.xlu0 %2303
        %2306 = vset.pattern.permute.xlu0 8
        %2307 = vperm.xlu0 %2306, %v805
        %v2308 = vpop.permute.xlu0 %2307
        %v2310 = vmul.f32 %v2230, %v2248
        %v2311 = vmul.f32 %v2231, %v2252
        %v2312 = vmul.f32 %v2232, %v2256
        %v2313 = vmul.f32 %v2233, %v2260
        %v2314 = vmul.f32 %v2234, %v2264
        %v2315 = vmul.f32 %v2235, %v2268
        %v2316 = vmul.f32 %v2236, %v2272
        %v2317 = vmul.f32 %v2237, %v2276
        %v2318 = vmul.f32 %v2238, %v2280
        %v2319 = vmul.f32 %v2239, %v2284
        %v2320 = vmul.f32 %v2240, %v2288
        %v2321 = vmul.f32 %v2241, %v2292
        %v2322 = vmul.f32 %v2242, %v2296
        %v2323 = vmul.f32 %v2243, %v2300
        %v2324 = vmul.f32 %v2244, %v2304
        %v2325 = vmul.f32 %v2245, %v2308
        %v2326 = vadd.f32 %v2149, %v2310
        %v2327 = vadd.f32 %v2150, %v2311
        %v2328 = vadd.f32 %v2151, %v2312
        %v2329 = vadd.f32 %v2152, %v2313
        %v2330 = vadd.f32 %v2153, %v2314
        %v2331 = vadd.f32 %v2154, %v2315
        %v2332 = vadd.f32 %v2155, %v2316
        %v2333 = vadd.f32 %v2156, %v2317
        %v2334 = vadd.f32 %v2157, %v2318
        %v2335 = vadd.f32 %v2158, %v2319
        %v2336 = vadd.f32 %v2159, %v2320
        %v2337 = vadd.f32 %v2160, %v2321
        %v2338 = vadd.f32 %v2161, %v2322
        %v2339 = vadd.f32 %v2162, %v2323
        %v2340 = vadd.f32 %v2163, %v2324
        %v2341 = vadd.f32 %v2164, %v2325
        %v2342 = vlaneseq
        %v2343 = vshrl.u32 %v2342, 7
        %v2344 = vsub.s32 0, %v2343
        %v2345 = vrot.slane %v807, %v2344
        %v2346 = vmul.f32 %v2326, %v2345
        %v2347 = vmul.f32 %v2327, %v2345
        %v2348 = vmul.f32 %v2328, %v2345
        %v2349 = vmul.f32 %v2329, %v2345
        %v2350 = vmul.f32 %v2330, %v2345
        %v2351 = vmul.f32 %v2331, %v2345
        %v2352 = vmul.f32 %v2332, %v2345
        %v2353 = vmul.f32 %v2333, %v2345
        %v2354 = vmul.f32 %v2334, %v2345
        %v2355 = vmul.f32 %v2335, %v2345
        %v2356 = vmul.f32 %v2336, %v2345
        %v2357 = vmul.f32 %v2337, %v2345
        %v2358 = vmul.f32 %v2338, %v2345
        %v2359 = vmul.f32 %v2339, %v2345
        %v2360 = vmul.f32 %v2340, %v2345
        %v2361 = vmul.f32 %v2341, %v2345
        %v2362 = vadd.f32 %v1811, %v2346
        %v2363 = vadd.f32 %v1812, %v2347
        %v2364 = vadd.f32 %v1813, %v2348
        %v2365 = vadd.f32 %v1814, %v2349
        %v2366 = vadd.f32 %v1815, %v2350
        %v2367 = vadd.f32 %v1816, %v2351
        %v2368 = vadd.f32 %v1817, %v2352
        %v2369 = vadd.f32 %v1818, %v2353
        %v2370 = vadd.f32 %v1819, %v2354
        %v2371 = vadd.f32 %v1820, %v2355
        %v2372 = vadd.f32 %v1821, %v2356
        %v2373 = vadd.f32 %v1822, %v2357
        %v2374 = vadd.f32 %v1823, %v2358
        %v2375 = vadd.f32 %v1824, %v2359
        %v2376 = vadd.f32 %v1825, %v2360
        %v2377 = vadd.f32 %v1826, %v2361
        %v2378 = vld [vmem:[%s4] sm:$0xff]
        %v2379 = vld [vmem:[%s4 + $0x8] sm:$0xff]
        %v2380 = vld [vmem:[%s4 + $0x10] sm:$0xff]
        %v2381 = vld [vmem:[%s4 + $0x18] sm:$0xff]
        %v2382 = vld [vmem:[%s4 + $0x20] sm:$0xff]
        %v2383 = vld [vmem:[%s4 + $0x28] sm:$0xff]
        %v2384 = vld [vmem:[%s4 + $0x30] sm:$0xff]
        %v2385 = vld [vmem:[%s4 + $0x38] sm:$0xff]
        %v2386 = vld [vmem:[%s4 + $0x40] sm:$0xff]
        %v2387 = vld [vmem:[%s4 + $0x48] sm:$0xff]
        %v2388 = vld [vmem:[%s4 + $0x50] sm:$0xff]
        %v2389 = vld [vmem:[%s4 + $0x58] sm:$0xff]
        %v2390 = vld [vmem:[%s4 + $0x60] sm:$0xff]
        %v2391 = vld [vmem:[%s4 + $0x68] sm:$0xff]
        %v2392 = vld [vmem:[%s4 + $0x70] sm:$0xff]
        %v2393 = vld [vmem:[%s4 + $0x78] sm:$0xff]
        %2395 = vset.pattern.permute.xlu0 0
        %2396 = vperm.xlu0 %2395, %v2378
        %v2397 = vpop.permute.xlu0 %2396
        %2400 = vset.pattern.permute.xlu0 0
        %2401 = vperm.xlu0 %2400, %v2379
        %v2402 = vpop.permute.xlu0 %2401
        %2405 = vset.pattern.permute.xlu0 0
        %2406 = vperm.xlu0 %2405, %v2380
        %v2407 = vpop.permute.xlu0 %2406
        %2410 = vset.pattern.permute.xlu0 0
        %2411 = vperm.xlu0 %2410, %v2381
        %v2412 = vpop.permute.xlu0 %2411
        %2415 = vset.pattern.permute.xlu0 0
        %2416 = vperm.xlu0 %2415, %v2382
        %v2417 = vpop.permute.xlu0 %2416
        %2420 = vset.pattern.permute.xlu0 0
        %2421 = vperm.xlu0 %2420, %v2383
        %v2422 = vpop.permute.xlu0 %2421
        %2425 = vset.pattern.permute.xlu0 0
        %2426 = vperm.xlu0 %2425, %v2384
        %v2427 = vpop.permute.xlu0 %2426
        %2430 = vset.pattern.permute.xlu0 0
        %2431 = vperm.xlu0 %2430, %v2385
        %v2432 = vpop.permute.xlu0 %2431
        %2435 = vset.pattern.permute.xlu0 0
        %2436 = vperm.xlu0 %2435, %v2386
        %v2437 = vpop.permute.xlu0 %2436
        %2440 = vset.pattern.permute.xlu0 0
        %2441 = vperm.xlu0 %2440, %v2387
        %v2442 = vpop.permute.xlu0 %2441
        %2445 = vset.pattern.permute.xlu0 0
        %2446 = vperm.xlu0 %2445, %v2388
        %v2447 = vpop.permute.xlu0 %2446
        %2450 = vset.pattern.permute.xlu0 0
        %2451 = vperm.xlu0 %2450, %v2389
        %v2452 = vpop.permute.xlu0 %2451
        %2455 = vset.pattern.permute.xlu0 0
        %2456 = vperm.xlu0 %2455, %v2390
        %v2457 = vpop.permute.xlu0 %2456
        %2460 = vset.pattern.permute.xlu0 0
        %2461 = vperm.xlu0 %2460, %v2391
        %v2462 = vpop.permute.xlu0 %2461
        %2465 = vset.pattern.permute.xlu0 0
        %2466 = vperm.xlu0 %2465, %v2392
        %v2467 = vpop.permute.xlu0 %2466
        %2470 = vset.pattern.permute.xlu0 0
        %2471 = vperm.xlu0 %2470, %v2393
        %v2472 = vpop.permute.xlu0 %2471
        %v2474 = vadd.f32 %v2362, %v2397
        %v2475 = vadd.f32 %v2363, %v2402
        %v2476 = vadd.f32 %v2364, %v2407
        %v2477 = vadd.f32 %v2365, %v2412
        %v2478 = vadd.f32 %v2366, %v2417
        %v2479 = vadd.f32 %v2367, %v2422
        %v2480 = vadd.f32 %v2368, %v2427
        %v2481 = vadd.f32 %v2369, %v2432
        %v2482 = vadd.f32 %v2370, %v2437
        %v2483 = vadd.f32 %v2371, %v2442
        %v2484 = vadd.f32 %v2372, %v2447
        %v2485 = vadd.f32 %v2373, %v2452
        %v2486 = vadd.f32 %v2374, %v2457
        %v2487 = vadd.f32 %v2375, %v2462
        %v2488 = vadd.f32 %v2376, %v2467
        %v2489 = vadd.f32 %v2377, %v2472
        %v2490 = vmax.f32 %v2474, 0.0
        %v2491 = vmax.f32 %v2475, 0.0
        %v2492 = vmax.f32 %v2476, 0.0
        %v2493 = vmax.f32 %v2477, 0.0
        %v2494 = vmax.f32 %v2478, 0.0
        %v2495 = vmax.f32 %v2479, 0.0
        %v2496 = vmax.f32 %v2480, 0.0
        %v2497 = vmax.f32 %v2481, 0.0
        %v2498 = vmax.f32 %v2482, 0.0
        %v2499 = vmax.f32 %v2483, 0.0
        %v2500 = vmax.f32 %v2484, 0.0
        %v2501 = vmax.f32 %v2485, 0.0
        %v2502 = vmax.f32 %v2486, 0.0
        %v2503 = vmax.f32 %v2487, 0.0
        %v2504 = vmax.f32 %v2488, 0.0
        %v2505 = vmax.f32 %v2489, 0.0
        %v2506 = vmin.f32 %v2490, 6.0
        %v2507 = vmin.f32 %v2491, 6.0
        %v2508 = vmin.f32 %v2492, 6.0
        %v2509 = vmin.f32 %v2493, 6.0
        %v2510 = vmin.f32 %v2494, 6.0
        %v2511 = vmin.f32 %v2495, 6.0
        %v2512 = vmin.f32 %v2496, 6.0
        %v2513 = vmin.f32 %v2497, 6.0
        %v2514 = vmin.f32 %v2498, 6.0
        %v2515 = vmin.f32 %v2499, 6.0
        %v2516 = vmin.f32 %v2500, 6.0
        %v2517 = vmin.f32 %v2501, 6.0
        %v2518 = vmin.f32 %v2502, 6.0
        %v2519 = vmin.f32 %v2503, 6.0
        %v2520 = vmin.f32 %v2504, 6.0
        %v2521 = vmin.f32 %v2505, 6.0
        %v2522 = vpack.c.bf16 %v2507, %v2506
        %v2523 = vpack.c.bf16 %v2509, %v2508
        %v2524 = vpack.c.bf16 %v2511, %v2510
        %v2525 = vpack.c.bf16 %v2513, %v2512
        %v2526 = vpack.c.bf16 %v2515, %v2514
        %v2527 = vpack.c.bf16 %v2517, %v2516
        %v2528 = vpack.c.bf16 %v2519, %v2518
        %v2529 = vpack.c.bf16 %v2521, %v2520
        %v2530 = vld [vmem:[%s5] sm:$0xf]
        %v2531 = vld [vmem:[%s5 + $0x4] sm:$0xf]
        %v2532 = vld [vmem:[%s5 + $0x8] sm:$0xf]
        %v2533 = vld [vmem:[%s5 + $0xc] sm:$0xf]
        %v2534 = vld [vmem:[%s6] sm:$0xff]
        %v2535 = vld [vmem:[%s6 + $0x8] sm:$0xff]
        %v2536 = vld [vmem:[%s6 + $0x10] sm:$0xff]
        %v2537 = vld [vmem:[%s6 + $0x18] sm:$0xff]
        %2539 = vset.pattern.permute.xlu0 0
        %2540 = vperm.xlu0 %2539, %v2534
        %v2541 = vpop.permute.xlu0 %2540
        %2544 = vset.pattern.permute.xlu0 0
        %2545 = vperm.xlu0 %2544, %v2535
        %v2546 = vpop.permute.xlu0 %2545
        %2549 = vset.pattern.permute.xlu0 0
        %2550 = vperm.xlu0 %2549, %v2536
        %v2551 = vpop.permute.xlu0 %2550
        %2554 = vset.pattern.permute.xlu0 0
        %2555 = vperm.xlu0 %2554, %v2537
        %v2556 = vpop.permute.xlu0 %2555
        %v2562 = vunpack.c.l.b16 %v2530
        %v2563 = vunpack.c.l.b16 %v2531
        %v2564 = vunpack.c.l.b16 %v2532
        %v2565 = vunpack.c.l.b16 %v2533
        %v2566 = vpack.c.b16 %v2563, %v2562
        %v2567 = vpack.c.b16 %v2565, %v2564
        %2570 = vmatprep.subr.bf16.mxu0 0
        %2571 = vmatpush1.bf16.msra.mxu0 %v2522
        %2572 = vmatprep.subr.bf16.mxu0 0
        %2573 = vmatpush1.bf16.msra.mxu0 %v2523
        %2574 = vmatprep.subr.bf16.mxu0 0
        %2575 = vmatpush1.bf16.msra.mxu0 %v2524
        %2576 = vmatprep.subr.bf16.mxu0 0
        %2577 = vmatpush1.bf16.msra.mxu0 %v2525
        %2578 = vmatprep.subr.bf16.mxu0 0
        %2579 = vmatpush1.bf16.msra.mxu0 %v2526
        %2580 = vmatprep.subr.bf16.mxu0 0
        %2581 = vmatpush1.bf16.msra.mxu0 %v2527
        %2582 = vmatprep.subr.bf16.mxu0 0
        %2583 = vmatpush1.bf16.msra.mxu0 %v2528
        %2584 = vmatprep.subr.bf16.mxu0 0
        %2585 = vmatpush1.bf16.msra.mxu0 %v2529
        %2586 = vmatprep.subr.bf16.mxu0 0
        %2587 = vmatpush1.bf16.msra.mxu0 0
        %2588 = vmatprep.subr.bf16.mxu0 0
        %2589 = vmatpush1.bf16.msra.mxu0 0
        %2590 = vmatprep.subr.bf16.mxu0 0
        %2591 = vmatpush1.bf16.msra.mxu0 0
        %2592 = vmatprep.subr.bf16.mxu0 0
        %2593 = vmatpush1.bf16.msra.mxu0 0
        %2594 = vmatprep.subr.bf16.mxu0 0
        %2595 = vmatpush1.bf16.msra.mxu0 0
        %2596 = vmatprep.subr.bf16.mxu0 0
        %2597 = vmatpush1.bf16.msra.mxu0 0
        %2598 = vmatprep.subr.bf16.mxu0 0
        %2599 = vmatpush1.bf16.msra.mxu0 0
        %2600 = vmatprep.subr.bf16.mxu0 0
        %2601 = vmatpush1.bf16.msra.mxu0 0
        %2602 = vmatprep.mubr.bf16.mxu0 0
        %2603 = vmatmul.mubr.bf16.gmra.mrb[0].mxu0 %v2566
        %v2604 = vpop.f32.mrb[0].mxu0
        %v2605 = vadd.f32 %v2541, %v2604
        %v2606 = vpop.f32.mrb[0].mxu0
        %v2607 = vpop.f32.mrb[0].mxu0
        %v2608 = vadd.f32 %v2546, %v2607
        %v2609 = vpop.f32.mrb[0].mxu0
        %2610 = vmatprep.mubr.bf16.mxu0 0
        %2611 = vmatmul.mubr.bf16.gmra.mrb[0].mxu0 %v2567
        %v2612 = vpop.f32.mrb[0].mxu0
        %v2613 = vadd.f32 %v2551, %v2612
        %v2614 = vpop.f32.mrb[0].mxu0
        %v2615 = vpop.f32.mrb[0].mxu0
        %v2616 = vadd.f32 %v2556, %v2615
        %v2617 = vpop.f32.mrb[0].mxu0
        %2618 = vdwg.mxu0
        %v2619 = vunpack.c.l.bf16 %v368
        %v2620 = vunpack.c.h.bf16 %v368
        %v2621 = vunpack.c.l.bf16 %v369
        %v2622 = vunpack.c.h.bf16 %v369
        %v2623 = vunpack.c.l.bf16 %v370
        %v2624 = vunpack.c.h.bf16 %v370
        %v2625 = vunpack.c.l.bf16 %v371
        %v2626 = vunpack.c.h.bf16 %v371
        %2635 = vrot.lane.b32.xlu0 %v2619, 112
        %v2636 = vpop.permute.xlu0 %2635
        %2637 = vrot.lane.b32.xlu0 %v2620, 112
        %v2638 = vpop.permute.xlu0 %2637
        %2639 = vrot.lane.b32.xlu0 %v2621, 112
        %v2640 = vpop.permute.xlu0 %2639
        %2641 = vrot.lane.b32.xlu0 %v2622, 112
        %v2642 = vpop.permute.xlu0 %2641
        %2643 = vrot.lane.b32.xlu0 %v2623, 112
        %v2644 = vpop.permute.xlu0 %2643
        %2645 = vrot.lane.b32.xlu0 %v2624, 112
        %v2646 = vpop.permute.xlu0 %2645
        %2647 = vrot.lane.b32.xlu0 %v2625, 112
        %v2648 = vpop.permute.xlu0 %2647
        %2649 = vrot.lane.b32.xlu0 %v2626, 112
        %v2650 = vpop.permute.xlu0 %2649
        %vm2651 = vcmask 916480
        %v2652 = vsel %vm2651, %v2636, %v2638
        %v2653 = vsel %vm2651, %v2640, %v2642
        %v2654 = vsel %vm2651, %v2644, %v2646
        %v2655 = vsel %vm2651, %v2648, %v2650
        %v2660 = vadd.f32 %v2605, %v2652
        %v2661 = vadd.f32 %v2608, %v2653
        %v2662 = vadd.f32 %v2613, %v2654
        %v2663 = vadd.f32 %v2616, %v2655
        %v2664 = vpack.c.bf16 %v2661, %v2660
        %v2665 = vpack.c.bf16 %v2663, %v2662
        %v2668 = vunpack.c.l.b16 %v2664
        %v2669 = vunpack.c.h.b16 %v2664
        %v2670 = vunpack.c.l.b16 %v2665
        %v2671 = vunpack.c.h.b16 %v2665
        %v2672 = vpack.c.b16 %v2668, %v2668
        %v2673 = vpack.c.b16 %v2669, %v2669
        %v2674 = vpack.c.b16 %v2670, %v2670
        %v2675 = vpack.c.b16 %v2671, %v2671
        %2680 = vst [vmem:[%s352] sm:$0xf] %v2672
        %2681 = vst [vmem:[%s352 + $0x4] sm:$0xf] %v2673
        %2682 = vst [vmem:[%s352 + $0x8] sm:$0xf] %v2674
        %2683 = vst [vmem:[%s352 + $0xc] sm:$0xf] %v2675
        %s2684 = sand.u32 %s244, 1
        %s2685 = scalar_lea.sflag [#allocation3], %s2684
        %s2686 = sand.u32 %s244, 1
        %s2687 = smul.addr %s2686, 16
        %s2688 = scalar_lea.vmem [#allocation2], %s2687
        // Predicated region
        $region57: #{tpu_custom_call.1} parent=55 // pred_check
          %p2689 = pneg %p254
        $region58: #{tpu_custom_call.1} parent=55 // pred_check_branch
          %2691 = sbr.rel (%p2689) target = $region60
        $region59: #{tpu_custom_call.1} parent=55 // pred_region
          %s2693 = ssub.s32 256, 256
          %2694 = vsyncadd %s2685, %s2693
          %s2695 = smul.addr %s27, 8
          %s2696 = sadd.s32 %s28, %s2695
          %s2697 = smul.addr %s2696, 64
          %s2698 = scalar_lea.hbm %s9, %s2697
          %s2699 = sshll.u32 %s2688, 4
          %s2700 = int_to_ptr.vmem [resolvable:$true] %s2699
          %2705 = dma.vmem_to_hbm [thread:$0]  %s2700, 256, %s2698, %s2685, 64, 128, 4
        $region60: #{tpu_custom_call.1} parent=55 // pred_fallthru
          _
      $region56: #{tpu_custom_call.1} parent=5 // pred_fallthru
        _
      %p2706 = scmp.le.s32.totalorder 2, %s18
      // Predicated region
      $region61: #{tpu_custom_call.1} parent=5 // pred_check
        %p2707 = pneg %p2706
      $region62: #{tpu_custom_call.1} parent=5 // pred_check_branch
        %2709 = sbr.rel (%p2707) target = $region64
      $region63: #{tpu_custom_call.1} parent=5 // pred_region
        %s2710 = ssub.s32 %s18, 2
        // Predicated region
        $region65: #{tpu_custom_call.1} parent=63 // pred_check
          %p2711 = pneg %p260
        $region66: #{tpu_custom_call.1} parent=63 // pred_check_branch
          %2713 = sbr.rel (%p2711) target = $region68
        $region67: #{tpu_custom_call.1} parent=63 // pred_region
          %s2714 = sand.u32 %s245, 1
          %s2715 = scalar_lea.sflag [#allocation3], %s2714
          %s2716 = sand.u32 %s245, 1
          %s2717 = smul.addr %s2716, 16
          %s2718 = scalar_lea.vmem [#allocation2], %s2717
          %2719 = dma.done %s2715, 256
        $region68: #{tpu_custom_call.1} parent=63 // pred_fallthru
          _
      $region64: #{tpu_custom_call.1} parent=5 // pred_fallthru
        _
    $region6: #{tpu_custom_call.1} parent=1 // loop_footer
      %s22 = sadd.s32 1, %s18
    $region7: #{tpu_custom_call.1} parent=1 // loop_footer_branch
      %17 = sbr.rel target = $region3
    $region8: #{tpu_custom_call.1} parent=1 // loop_exit
      _
    %2720 = vsyncpa [#allocation3], 1
    %s2721 = scalar_lea.sflag [#allocation3], 1
    %2722 = vsyncpa %s2721, 1

</llo_original>
